<compile_context>
chip_gen: v5e
topology: v5e:2x2
jax: 0.10.0
libtpu: 0.0.40
codegen_flags: <defaults>
</compile_context>

<pallas_src>
import functools

import jax
import jax.numpy as jnp
import numpy as np
from jax import lax
from jax.experimental import pallas as pl
from jax.experimental.pallas import tpu as pltpu


# ----------------------------------------------------------------------------
# Kernel
# ----------------------------------------------------------------------------
def _resblock_kernel(xcol_ref, w1_ref, b1_ref, srow_ref, w2x_ref, wdx_ref,
                     b2d_ref, o_ref, *, cout, h):
    """Fused ResBlock forward for one batch element (grid iterates over N).

    xcol_ref: (1, D*H, 9*W*Cin)   im2col over (kd,kh); lanes = (tap, x, cin)
    w1_ref  : (9*W*Cin, W*Cout)   conv1 weights, kw banded along x (pad folded in)
    b1_ref  : (1, W*Cout)         conv1 bias tiled over x
    srow_ref: (9*Dp*Hp, D*H)      0/1 row selection per conv2 tap (z/y shift + pad)
    w2x_ref : (9, W*Cout, Wp*Cout) conv2 tap weights, even-x compaction + kw band
    wdx_ref : (W*Cin, Wp*Cout)    downsample 1x1x1 stride-2: even-x pick + 1x1 conv
    b2d_ref : (1, Wp*Cout)        conv2 bias + downsample bias tiled over x
    o_ref   : (1, Dp*Hp, Wp*Cout)
    """
    f32 = jnp.float32
    xcol = xcol_ref[0]                       # (D*H, 9*W*Cin)
    wcin = xcol.shape[1] // 9
    dphp = o_ref.shape[1]
    wpc = o_ref.shape[2]

    # ---- conv1 (3x3x3, pad=1): one MXU matmul ----
    a1 = jnp.dot(xcol, w1_ref[...], preferred_element_type=f32) + b1_ref[...]

    # ---- MaxPool3d(2): running shift+max over x (lanes), y (rows), z (rows*H) ----
    def rshift(a, k):   # cyclic shift along rows (sublanes); wrap rows are unused
        return jnp.concatenate([a[k:, :], a[:k, :]], axis=0)

    def lshift(a, k):   # cyclic shift along lanes; wrap lane-block is unused
        return jnp.concatenate([a[:, k:], a[:, :k]], axis=1)

    p = jnp.maximum(a1, lshift(a1, cout))    # pair x with x+1
    p = jnp.maximum(p, rshift(p, 1))         # pair y with y+1
    p = jnp.maximum(p, rshift(p, h))         # pair z with z+1
    r = jnp.maximum(p, 0.0)                  # relu1 (pool / relu commute)

    # ---- conv2 (3x3x3, pad=1) on the pooled activation ----
    # One big row-selection matmul for all 9 (kd,kh) taps, then 9 banded
    # tap-weight matmuls (even-x compaction + kw + x-padding folded in).
    g = jnp.dot(srow_ref[...], r, preferred_element_type=f32)   # (9*DpHp, W*Cout)
    acc = jnp.zeros((dphp, wpc), f32)
    for k in range(9):
        acc = acc + jnp.dot(g[k * dphp:(k + 1) * dphp, :], w2x_ref[k],
                            preferred_element_type=f32)

    # ---- downsample: 1x1x1 stride-2 conv on the raw input ----
    # centre im2col tap (kd=kh=1) is the un-shifted input; centre-tap row
    # selection picks the even (z, y) rows.
    xin = xcol[:, 4 * wcin:5 * wcin]                              # (D*H, W*Cin)
    gds = jnp.dot(srow_ref[4 * dphp:5 * dphp, :], xin,
                  preferred_element_type=f32)                     # (DpHp, W*Cin)
    ds = jnp.dot(gds, wdx_ref[...], preferred_element_type=f32)   # (DpHp, Wp*Cout)

    # ---- residual add + biases -> relu2 ----
    o_ref[0] = jnp.maximum(acc + ds + b2d_ref[...], 0.0).astype(o_ref.dtype)


# ----------------------------------------------------------------------------
# Wrapper-side constant construction (all tiny, shape-static)
# ----------------------------------------------------------------------------
def _banded_weights(w, n):
    """w: (3,3,3,Ci,Co) DHWIO -> (9, n*Ci, n*Co) banded-along-W tap matrices."""
    _, _, _, ci, co = w.shape
    place = np.zeros((3, n, n), np.float32)
    xo = np.arange(n)
    for kw in range(3):
        xi = xo + kw - 1                      # x-padding folded into the band
        ok = (xi >= 0) & (xi < n)
        place[kw, xi[ok], xo[ok]] = 1.0
    big = jnp.einsum('kpq,dhkco->dhpcqo', jnp.asarray(place), w)
    return big.reshape(9, n * ci, n * co)


def _conv2_tap_weights(w2, W):
    """w2: (3,3,3,Co,Co) -> (9, W*Co, Wp*Co).

    Per (kd,kh) tap: map un-compacted lanes (only even x blocks carry pooled
    values) to pooled output lanes, applying the kw band + x zero padding.
    """
    _, _, _, ci, co = w2.shape
    Wp = W // 2
    place = np.zeros((3, W, Wp), np.float32)
    xo = np.arange(Wp)
    for kw in range(3):
        xi = xo + kw - 1                      # pooled input x coordinate
        ok = (xi >= 0) & (xi < Wp)
        place[kw, 2 * xi[ok], xo[ok]] = 1.0   # pooled x lives at even lane blocks
    big = jnp.einsum('kpq,dhkco->dhpcqo', jnp.asarray(place), w2)
    return big.reshape(9, W * ci, Wp * co)


def _ds_weights(wd2, n):
    """wd2: (Cin, Cout) -> (n*Cin, (n//2)*Cout): pick even x, apply 1x1 conv."""
    half = n // 2
    place = np.zeros((n, half), np.float32)
    place[2 * np.arange(half), np.arange(half)] = 1.0
    big = jnp.einsum('pq,co->pcqo', jnp.asarray(place), wd2)
    return big.reshape(n * wd2.shape[0], half * wd2.shape[1])


def _conv2_row_select(D, H):
    """0/1 (9, Dp*Hp, D*H): per conv2 tap, pick the (shifted) even (z,y) rows.

    Out-of-range taps leave the row all-zero, which realizes conv2's zero
    padding along z / y.
    """
    Dp, Hp = D // 2, H // 2
    s = np.zeros((9, Dp * Hp, D * H), np.float32)
    for kd in range(3):
        for kh in range(3):
            k = kd * 3 + kh
            for zo in range(Dp):
                zi = zo + kd - 1
                if not 0 <= zi < Dp:
                    continue
                for yo in range(Hp):
                    yi = yo + kh - 1
                    if not 0 <= yi < Hp:
                        continue
                    s[k, zo * Hp + yo, (2 * zi) * H + 2 * yi] = 1.0
    return s


@jax.jit
def resblock_pallas(x, w1, b1, w2, b2, wd, bd):
    N, D, H, W, Cin = x.shape
    Cout = w1.shape[-1]
    Dp, Hp, Wp = D // 2, H // 2, W // 2

    # glue: im2col over (kd, kh) into lanes; kw / x-padding fold into weights
    xp = jnp.pad(x, ((0, 0), (1, 1), (1, 1), (0, 0), (0, 0)))
    taps = [xp[:, kd:kd + D, kh:kh + H] for kd in range(3) for kh in range(3)]
    xcol = jnp.stack(taps, axis=3).reshape(N, D * H, 9 * W * Cin)

    w1cat = _banded_weights(w1, W).reshape(9 * W * Cin, W * Cout)
    w2x = _conv2_tap_weights(w2, W)                               # (9, W*Cout, Wp*Cout)
    wdx = _ds_weights(wd.reshape(Cin, Cout), W)                   # (W*Cin, Wp*Cout)
    srow = jnp.asarray(_conv2_row_select(D, H)).reshape(9 * Dp * Hp, D * H)
    b1row = jnp.tile(b1, W).reshape(1, W * Cout)
    b2drow = (jnp.tile(b2, Wp) + jnp.tile(bd, Wp)).reshape(1, Wp * Cout)

    def _bcast(shape):
        zeros = (0,) * len(shape)
        return pl.BlockSpec(shape, lambda n, z=zeros: z)

    # advisory cost estimate (matmul work actually issued by the kernel)
    m, dphp = D * H, Dp * Hp
    wco, wpc, wci = W * Cout, Wp * Cout, W * Cin
    flops = N * 2 * (m * (9 * wci) * wco          # conv1
                     + (9 * dphp) * m * wco       # conv2 row selection
                     + 9 * dphp * wco * wpc       # conv2 tap weights
                     + dphp * m * wci             # downsample row selection
                     + dphp * wci * wpc)          # downsample 1x1
    bytes_accessed = 4 * (xcol.size + w1cat.size + srow.size + w2x.size
                          + wdx.size + b1row.size + b2drow.size
                          + N * dphp * wpc)

    out = pl.pallas_call(
        functools.partial(_resblock_kernel, cout=Cout, h=H),
        out_shape=jax.ShapeDtypeStruct((N, Dp * Hp, Wp * Cout), x.dtype),
        grid_spec=pltpu.PrefetchScalarGridSpec(
            num_scalar_prefetch=0,
            grid=(N,),
            in_specs=[
                pl.BlockSpec((1, D * H, 9 * W * Cin), lambda n: (n, 0, 0)),
                _bcast((9 * W * Cin, W * Cout)),
                _bcast((1, W * Cout)),
                _bcast((9 * Dp * Hp, D * H)),
                _bcast((9, W * Cout, Wp * Cout)),
                _bcast((W * Cin, Wp * Cout)),
                _bcast((1, Wp * Cout)),
            ],
            out_specs=pl.BlockSpec((1, Dp * Hp, Wp * Cout),
                                   lambda n: (n, 0, 0)),
        ),
        compiler_params=pltpu.CompilerParams(
            dimension_semantics=("parallel",)),
        cost_estimate=pl.CostEstimate(flops=flops, transcendentals=0,
                                      bytes_accessed=bytes_accessed),
    )(xcol, w1cat, b1row, srow, w2x, wdx, b2drow)

    return out.reshape(N, Dp, Hp, Wp, Cout)


# ----------------------------------------------------------------------------
# Pure-JAX reference (same NDHWC / DHWIO layout)
# ----------------------------------------------------------------------------
def resblock_ref(x, w1, b1, w2, b2, wd, bd):
    dn = ('NDHWC', 'DHWIO', 'NDHWC')
    y = lax.conv_general_dilated(x, w1, (1, 1, 1), [(1, 1)] * 3,
                                 dimension_numbers=dn) + b1
    y = lax.reduce_window(y, jnp.array(-jnp.inf, y.dtype), lax.max,
                          (1, 2, 2, 2, 1), (1, 2, 2, 2, 1), 'VALID')
    y = jnp.maximum(y, 0.0)
    y = lax.conv_general_dilated(y, w2, (1, 1, 1), [(1, 1)] * 3,
                                 dimension_numbers=dn) + b2
    d = lax.conv_general_dilated(x, wd, (2, 2, 2), [(0, 0)] * 3,
                                 dimension_numbers=dn) + bd
    return jnp.maximum(y + d, 0.0)


if __name__ == "__main__":
    N, Cin, Cout, D = 2, 4, 8, 8        # NCDHW equivalent: (2, 4, 8, 8, 8)
    key = jax.random.PRNGKey(0)
    ks = jax.random.split(key, 7)
    x = jax.random.normal(ks[0], (N, D, D, D, Cin), jnp.float32)
    w1 = 0.1 * jax.random.normal(ks[1], (3, 3, 3, Cin, Cout), jnp.float32)
    b1 = 0.1 * jax.random.normal(ks[2], (Cout,), jnp.float32)
    w2 = 0.1 * jax.random.normal(ks[3], (3, 3, 3, Cout, Cout), jnp.float32)
    b2 = 0.1 * jax.random.normal(ks[4], (Cout,), jnp.float32)
    wd = 0.1 * jax.random.normal(ks[5], (1, 1, 1, Cin, Cout), jnp.float32)
    bd = 0.1 * jax.random.normal(ks[6], (Cout,), jnp.float32)

    out = jax.block_until_ready(resblock_pallas(x, w1, b1, w2, b2, wd, bd))
    ref = jax.block_until_ready(resblock_ref(x, w1, b1, w2, b2, wd, bd))

    assert out.shape == (N, D // 2, D // 2, D // 2, Cout), out.shape
    err = float(jnp.max(jnp.abs(out - ref)))
    assert err < 1e-3, f"max abs err {err}"
    print("KERNEL_OK")
</pallas_src>

<mosaic_0001>
module attributes {stable_mosaic.version = 11 : i64} {
  func.func @_resblock_kernel(%arg0: i32, %arg1: memref<1x64x288xf32, #tpu.memory_space<vmem>>, %arg2: memref<288x64xf32, #tpu.memory_space<vmem>>, %arg3: memref<1x64xf32, #tpu.memory_space<vmem>>, %arg4: memref<144x64xf32, #tpu.memory_space<vmem>>, %arg5: memref<9x64x32xf32, #tpu.memory_space<vmem>>, %arg6: memref<32x32xf32, #tpu.memory_space<vmem>>, %arg7: memref<1x32xf32, #tpu.memory_space<vmem>>, %arg8: memref<1x16x32xf32, #tpu.memory_space<vmem>>) attributes {dimension_semantics = [#tpu.dimension_semantics<parallel>], iteration_bounds = array<i64: 2>, scalar_prefetch = 0 : i64, scratch_operands = 0 : i64, tpu.core_type = #tpu.core_type<tc>, window_params = [{transform_indices = @transform_0, window_bounds = array<i64: 1, 64, 288>}, {pipeline_mode = #tpu.pipeline_mode<synchronous>, transform_indices = @transform_1, window_bounds = array<i64: 288, 64>}, {pipeline_mode = #tpu.pipeline_mode<synchronous>, transform_indices = @transform_2, window_bounds = array<i64: 1, 64>}, {pipeline_mode = #tpu.pipeline_mode<synchronous>, transform_indices = @transform_3, window_bounds = array<i64: 144, 64>}, {pipeline_mode = #tpu.pipeline_mode<synchronous>, transform_indices = @transform_4, window_bounds = array<i64: 9, 64, 32>}, {pipeline_mode = #tpu.pipeline_mode<synchronous>, transform_indices = @transform_5, window_bounds = array<i64: 32, 32>}, {pipeline_mode = #tpu.pipeline_mode<synchronous>, transform_indices = @transform_6, window_bounds = array<i64: 1, 32>}, {transform_indices = @transform_7, window_bounds = array<i64: 1, 16, 32>}]} {
    %c0 = arith.constant 0 : index
    %c0_0 = arith.constant 0 : index
    %c0_1 = arith.constant 0 : index
    %0 = vector.load %arg1[%c0, %c0_0, %c0_1] : memref<1x64x288xf32, #tpu.memory_space<vmem>>, vector<1x64x288xf32>
    %1 = vector.shape_cast %0 : vector<1x64x288xf32> to vector<64x288xf32>
    %c0_2 = arith.constant 0 : index
    %c0_3 = arith.constant 0 : index
    %2 = vector.load %arg2[%c0_2, %c0_3] : memref<288x64xf32, #tpu.memory_space<vmem>>, vector<288x64xf32>
    %cst = arith.constant dense<0.000000e+00> : vector<64x64xf32>
    %3 = tpu.matmul %1, %2, %cst {dimension_numbers = #tpu.dot_dimension_numbers<[1], [0], [0], [1], [0, 0, 1, 1], [], []>} : vector<64x288xf32>, vector<288x64xf32>, vector<64x64xf32> -> vector<64x64xf32>
    %c0_4 = arith.constant 0 : index
    %c0_5 = arith.constant 0 : index
    %4 = vector.load %arg3[%c0_4, %c0_5] : memref<1x64xf32, #tpu.memory_space<vmem>>, vector<1x64xf32>
    %5 = vector.broadcast %4 : vector<1x64xf32> to vector<64x64xf32>
    %6 = arith.addf %3, %5 : vector<64x64xf32>
    %7 = vector.extract_strided_slice %6 {offsets = [0, 8], sizes = [64, 56], strides = [1, 1]} : vector<64x64xf32> to vector<64x56xf32>
    %8 = vector.extract_strided_slice %6 {offsets = [0, 0], sizes = [64, 8], strides = [1, 1]} : vector<64x64xf32> to vector<64x8xf32>
    %9 = tpu.concatenate %7, %8 in 1 : vector<64x56xf32>, vector<64x8xf32> -> vector<64x64xf32>
    %10 = arith.maximumf %6, %9 : vector<64x64xf32>
    %11 = vector.extract_strided_slice %10 {offsets = [1, 0], sizes = [63, 64], strides = [1, 1]} : vector<64x64xf32> to vector<63x64xf32>
    %12 = vector.extract_strided_slice %10 {offsets = [0, 0], sizes = [1, 64], strides = [1, 1]} : vector<64x64xf32> to vector<1x64xf32>
    %13 = tpu.concatenate %11, %12 in 0 : vector<63x64xf32>, vector<1x64xf32> -> vector<64x64xf32>
    %14 = arith.maximumf %10, %13 : vector<64x64xf32>
    %15 = vector.extract_strided_slice %14 {offsets = [8, 0], sizes = [56, 64], strides = [1, 1]} : vector<64x64xf32> to vector<56x64xf32>
    %16 = vector.extract_strided_slice %14 {offsets = [0, 0], sizes = [8, 64], strides = [1, 1]} : vector<64x64xf32> to vector<8x64xf32>
    %17 = tpu.concatenate %15, %16 in 0 : vector<56x64xf32>, vector<8x64xf32> -> vector<64x64xf32>
    %18 = arith.maximumf %14, %17 : vector<64x64xf32>
    %cst_6 = arith.constant 0.000000e+00 : f32
    %19 = vector.broadcast %cst_6 : f32 to vector<64x64xf32>
    %20 = arith.maximumf %18, %19 : vector<64x64xf32>
    %c0_7 = arith.constant 0 : index
    %c0_8 = arith.constant 0 : index
    %21 = vector.load %arg4[%c0_7, %c0_8] : memref<144x64xf32, #tpu.memory_space<vmem>>, vector<144x64xf32>
    %cst_9 = arith.constant dense<0.000000e+00> : vector<144x64xf32>
    %22 = tpu.matmul %21, %20, %cst_9 {dimension_numbers = #tpu.dot_dimension_numbers<[1], [0], [0], [1], [0, 0, 1, 1], [], []>} : vector<144x64xf32>, vector<64x64xf32>, vector<144x64xf32> -> vector<144x64xf32>
    %cst_10 = arith.constant 0.000000e+00 : f32
    %23 = vector.broadcast %cst_10 : f32 to vector<16x32xf32>
    %24 = vector.extract_strided_slice %22 {offsets = [0, 0], sizes = [16, 64], strides = [1, 1]} : vector<144x64xf32> to vector<16x64xf32>
    %c0_11 = arith.constant 0 : index
    %c0_12 = arith.constant 0 : index
    %c0_13 = arith.constant 0 : index
    %25 = vector.load %arg5[%c0_11, %c0_12, %c0_13] : memref<9x64x32xf32, #tpu.memory_space<vmem>>, vector<1x64x32xf32>
    %26 = vector.shape_cast %25 : vector<1x64x32xf32> to vector<64x32xf32>
    %cst_14 = arith.constant dense<0.000000e+00> : vector<16x32xf32>
    %27 = tpu.matmul %24, %26, %cst_14 {dimension_numbers = #tpu.dot_dimension_numbers<[1], [0], [0], [1], [0, 0, 1, 1], [], []>} : vector<16x64xf32>, vector<64x32xf32>, vector<16x32xf32> -> vector<16x32xf32>
    %28 = arith.addf %23, %27 : vector<16x32xf32>
    %29 = vector.extract_strided_slice %22 {offsets = [16, 0], sizes = [16, 64], strides = [1, 1]} : vector<144x64xf32> to vector<16x64xf32>
    %c1 = arith.constant 1 : index
    %c0_15 = arith.constant 0 : index
    %c0_16 = arith.constant 0 : index
    %30 = vector.load %arg5[%c1, %c0_15, %c0_16] : memref<9x64x32xf32, #tpu.memory_space<vmem>>, vector<1x64x32xf32>
    %31 = vector.shape_cast %30 : vector<1x64x32xf32> to vector<64x32xf32>
    %cst_17 = arith.constant dense<0.000000e+00> : vector<16x32xf32>
    %32 = tpu.matmul %29, %31, %cst_17 {dimension_numbers = #tpu.dot_dimension_numbers<[1], [0], [0], [1], [0, 0, 1, 1], [], []>} : vector<16x64xf32>, vector<64x32xf32>, vector<16x32xf32> -> vector<16x32xf32>
    %33 = arith.addf %28, %32 : vector<16x32xf32>
    %34 = vector.extract_strided_slice %22 {offsets = [32, 0], sizes = [16, 64], strides = [1, 1]} : vector<144x64xf32> to vector<16x64xf32>
    %c2 = arith.constant 2 : index
    %c0_18 = arith.constant 0 : index
    %c0_19 = arith.constant 0 : index
    %35 = vector.load %arg5[%c2, %c0_18, %c0_19] : memref<9x64x32xf32, #tpu.memory_space<vmem>>, vector<1x64x32xf32>
    %36 = vector.shape_cast %35 : vector<1x64x32xf32> to vector<64x32xf32>
    %cst_20 = arith.constant dense<0.000000e+00> : vector<16x32xf32>
    %37 = tpu.matmul %34, %36, %cst_20 {dimension_numbers = #tpu.dot_dimension_numbers<[1], [0], [0], [1], [0, 0, 1, 1], [], []>} : vector<16x64xf32>, vector<64x32xf32>, vector<16x32xf32> -> vector<16x32xf32>
    %38 = arith.addf %33, %37 : vector<16x32xf32>
    %39 = vector.extract_strided_slice %22 {offsets = [48, 0], sizes = [16, 64], strides = [1, 1]} : vector<144x64xf32> to vector<16x64xf32>
    %c3 = arith.constant 3 : index
    %c0_21 = arith.constant 0 : index
    %c0_22 = arith.constant 0 : index
    %40 = vector.load %arg5[%c3, %c0_21, %c0_22] : memref<9x64x32xf32, #tpu.memory_space<vmem>>, vector<1x64x32xf32>
    %41 = vector.shape_cast %40 : vector<1x64x32xf32> to vector<64x32xf32>
    %cst_23 = arith.constant dense<0.000000e+00> : vector<16x32xf32>
    %42 = tpu.matmul %39, %41, %cst_23 {dimension_numbers = #tpu.dot_dimension_numbers<[1], [0], [0], [1], [0, 0, 1, 1], [], []>} : vector<16x64xf32>, vector<64x32xf32>, vector<16x32xf32> -> vector<16x32xf32>
    %43 = arith.addf %38, %42 : vector<16x32xf32>
    %44 = vector.extract_strided_slice %22 {offsets = [64, 0], sizes = [16, 64], strides = [1, 1]} : vector<144x64xf32> to vector<16x64xf32>
    %c4 = arith.constant 4 : index
    %c0_24 = arith.constant 0 : index
    %c0_25 = arith.constant 0 : index
    %45 = vector.load %arg5[%c4, %c0_24, %c0_25] : memref<9x64x32xf32, #tpu.memory_space<vmem>>, vector<1x64x32xf32>
    %46 = vector.shape_cast %45 : vector<1x64x32xf32> to vector<64x32xf32>
    %cst_26 = arith.constant dense<0.000000e+00> : vector<16x32xf32>
    %47 = tpu.matmul %44, %46, %cst_26 {dimension_numbers = #tpu.dot_dimension_numbers<[1], [0], [0], [1], [0, 0, 1, 1], [], []>} : vector<16x64xf32>, vector<64x32xf32>, vector<16x32xf32> -> vector<16x32xf32>
    %48 = arith.addf %43, %47 : vector<16x32xf32>
    %49 = vector.extract_strided_slice %22 {offsets = [80, 0], sizes = [16, 64], strides = [1, 1]} : vector<144x64xf32> to vector<16x64xf32>
    %c5 = arith.constant 5 : index
    %c0_27 = arith.constant 0 : index
    %c0_28 = arith.constant 0 : index
    %50 = vector.load %arg5[%c5, %c0_27, %c0_28] : memref<9x64x32xf32, #tpu.memory_space<vmem>>, vector<1x64x32xf32>
    %51 = vector.shape_cast %50 : vector<1x64x32xf32> to vector<64x32xf32>
    %cst_29 = arith.constant dense<0.000000e+00> : vector<16x32xf32>
    %52 = tpu.matmul %49, %51, %cst_29 {dimension_numbers = #tpu.dot_dimension_numbers<[1], [0], [0], [1], [0, 0, 1, 1], [], []>} : vector<16x64xf32>, vector<64x32xf32>, vector<16x32xf32> -> vector<16x32xf32>
    %53 = arith.addf %48, %52 : vector<16x32xf32>
    %54 = vector.extract_strided_slice %22 {offsets = [96, 0], sizes = [16, 64], strides = [1, 1]} : vector<144x64xf32> to vector<16x64xf32>
    %c6 = arith.constant 6 : index
    %c0_30 = arith.constant 0 : index
    %c0_31 = arith.constant 0 : index
    %55 = vector.load %arg5[%c6, %c0_30, %c0_31] : memref<9x64x32xf32, #tpu.memory_space<vmem>>, vector<1x64x32xf32>
    %56 = vector.shape_cast %55 : vector<1x64x32xf32> to vector<64x32xf32>
    %cst_32 = arith.constant dense<0.000000e+00> : vector<16x32xf32>
    %57 = tpu.matmul %54, %56, %cst_32 {dimension_numbers = #tpu.dot_dimension_numbers<[1], [0], [0], [1], [0, 0, 1, 1], [], []>} : vector<16x64xf32>, vector<64x32xf32>, vector<16x32xf32> -> vector<16x32xf32>
    %58 = arith.addf %53, %57 : vector<16x32xf32>
    %59 = vector.extract_strided_slice %22 {offsets = [112, 0], sizes = [16, 64], strides = [1, 1]} : vector<144x64xf32> to vector<16x64xf32>
    %c7 = arith.constant 7 : index
    %c0_33 = arith.constant 0 : index
    %c0_34 = arith.constant 0 : index
    %60 = vector.load %arg5[%c7, %c0_33, %c0_34] : memref<9x64x32xf32, #tpu.memory_space<vmem>>, vector<1x64x32xf32>
    %61 = vector.shape_cast %60 : vector<1x64x32xf32> to vector<64x32xf32>
    %cst_35 = arith.constant dense<0.000000e+00> : vector<16x32xf32>
    %62 = tpu.matmul %59, %61, %cst_35 {dimension_numbers = #tpu.dot_dimension_numbers<[1], [0], [0], [1], [0, 0, 1, 1], [], []>} : vector<16x64xf32>, vector<64x32xf32>, vector<16x32xf32> -> vector<16x32xf32>
    %63 = arith.addf %58, %62 : vector<16x32xf32>
    %64 = vector.extract_strided_slice %22 {offsets = [128, 0], sizes = [16, 64], strides = [1, 1]} : vector<144x64xf32> to vector<16x64xf32>
    %c8 = arith.constant 8 : index
    %c0_36 = arith.constant 0 : index
    %c0_37 = arith.constant 0 : index
    %65 = vector.load %arg5[%c8, %c0_36, %c0_37] : memref<9x64x32xf32, #tpu.memory_space<vmem>>, vector<1x64x32xf32>
    %66 = vector.shape_cast %65 : vector<1x64x32xf32> to vector<64x32xf32>
    %cst_38 = arith.constant dense<0.000000e+00> : vector<16x32xf32>
    %67 = tpu.matmul %64, %66, %cst_38 {dimension_numbers = #tpu.dot_dimension_numbers<[1], [0], [0], [1], [0, 0, 1, 1], [], []>} : vector<16x64xf32>, vector<64x32xf32>, vector<16x32xf32> -> vector<16x32xf32>
    %68 = arith.addf %63, %67 : vector<16x32xf32>
    %69 = vector.extract_strided_slice %1 {offsets = [0, 128], sizes = [64, 32], strides = [1, 1]} : vector<64x288xf32> to vector<64x32xf32>
    %c64 = arith.constant 64 : index
    %c0_39 = arith.constant 0 : index
    %70 = vector.load %arg4[%c64, %c0_39] : memref<144x64xf32, #tpu.memory_space<vmem>>, vector<16x64xf32>
    %cst_40 = arith.constant dense<0.000000e+00> : vector<16x32xf32>
    %71 = tpu.matmul %70, %69, %cst_40 {dimension_numbers = #tpu.dot_dimension_numbers<[1], [0], [0], [1], [0, 0, 1, 1], [], []>} : vector<16x64xf32>, vector<64x32xf32>, vector<16x32xf32> -> vector<16x32xf32>
    %c0_41 = arith.constant 0 : index
    %c0_42 = arith.constant 0 : index
    %72 = vector.load %arg6[%c0_41, %c0_42] : memref<32x32xf32, #tpu.memory_space<vmem>>, vector<32x32xf32>
    %cst_43 = arith.constant dense<0.000000e+00> : vector<16x32xf32>
    %73 = tpu.matmul %71, %72, %cst_43 {dimension_numbers = #tpu.dot_dimension_numbers<[1], [0], [0], [1], [0, 0, 1, 1], [], []>} : vector<16x32xf32>, vector<32x32xf32>, vector<16x32xf32> -> vector<16x32xf32>
    %74 = arith.addf %68, %73 : vector<16x32xf32>
    %c0_44 = arith.constant 0 : index
    %c0_45 = arith.constant 0 : index
    %75 = vector.load %arg7[%c0_44, %c0_45] : memref<1x32xf32, #tpu.memory_space<vmem>>, vector<1x32xf32>
    %76 = vector.broadcast %75 : vector<1x32xf32> to vector<16x32xf32>
    %77 = arith.addf %74, %76 : vector<16x32xf32>
    %cst_46 = arith.constant 0.000000e+00 : f32
    %78 = vector.broadcast %cst_46 : f32 to vector<16x32xf32>
    %79 = arith.maximumf %77, %78 : vector<16x32xf32>
    %c0_47 = arith.constant 0 : index
    %c0_48 = arith.constant 0 : index
    %c0_49 = arith.constant 0 : index
    %80 = vector.load %arg8[%c0_47, %c0_48, %c0_49] : memref<1x16x32xf32, #tpu.memory_space<vmem>>, vector<1x16x32xf32>
    %81 = vector.shape_cast %80 : vector<1x16x32xf32> to vector<16x32xf32>
    %82 = vector.shape_cast %79 : vector<16x32xf32> to vector<1x16x32xf32>
    tpu.vector_store %arg8[%c0_47, %c0_48, %c0_49], %82 {strides = array<i32>} : memref<1x16x32xf32, #tpu.memory_space<vmem>>, vector<1x16x32xf32>,
    return
  }
  func.func @transform_0(%arg0: i32) -> (i32, i32, i32) {
    %c0_i32 = arith.constant 0 : i32
    %c0_i32_0 = arith.constant 0 : i32
    %c0_i32_1 = arith.constant 0 : i32
    return %arg0, %c0_i32, %c0_i32_0 : i32, i32, i32
  }
  func.func @transform_1(%arg0: i32) -> (i32, i32) {
    %c0_i32 = arith.constant 0 : i32
    %c0_i32_0 = arith.constant 0 : i32
    %c0_i32_1 = arith.constant 0 : i32
    return %c0_i32, %c0_i32_0 : i32, i32
  }
  func.func @transform_2(%arg0: i32) -> (i32, i32) {
    %c0_i32 = arith.constant 0 : i32
    %c0_i32_0 = arith.constant 0 : i32
    %c0_i32_1 = arith.constant 0 : i32
    return %c0_i32, %c0_i32_0 : i32, i32
  }
  func.func @transform_3(%arg0: i32) -> (i32, i32) {
    %c0_i32 = arith.constant 0 : i32
    %c0_i32_0 = arith.constant 0 : i32
    %c0_i32_1 = arith.constant 0 : i32
    return %c0_i32, %c0_i32_0 : i32, i32
  }
  func.func @transform_4(%arg0: i32) -> (i32, i32, i32) {
    %c0_i32 = arith.constant 0 : i32
    %c0_i32_0 = arith.constant 0 : i32
    %c0_i32_1 = arith.constant 0 : i32
    %c0_i32_2 = arith.constant 0 : i32
    return %c0_i32, %c0_i32_0, %c0_i32_1 : i32, i32, i32
  }
  func.func @transform_5(%arg0: i32) -> (i32, i32) {
    %c0_i32 = arith.constant 0 : i32
    %c0_i32_0 = arith.constant 0 : i32
    %c0_i32_1 = arith.constant 0 : i32
    return %c0_i32, %c0_i32_0 : i32, i32
  }
  func.func @transform_6(%arg0: i32) -> (i32, i32) {
    %c0_i32 = arith.constant 0 : i32
    %c0_i32_0 = arith.constant 0 : i32
    %c0_i32_1 = arith.constant 0 : i32
    return %c0_i32, %c0_i32_0 : i32, i32
  }
  func.func @transform_7(%arg0: i32) -> (i32, i32, i32) {
    %c0_i32 = arith.constant 0 : i32
    %c0_i32_0 = arith.constant 0 : i32
    %c0_i32_1 = arith.constant 0 : i32
    return %arg0, %c0_i32, %c0_i32_0 : i32, i32, i32
  }
}

</mosaic_0001>

<llo_original>
// kernel: tile.18
$region0: #{tile.18}
  #allocation0 [shape = 's32[1]{0}', space=sflag, size = 0x4, scoped, tag = 'scoped memory for tile.18']
  %s0 = inlined_call_operand.vmem [shape: f32[8], index: 0, kind: input, shape index: {}]
  %s1 = inlined_call_operand.vmem [shape: f32[8,8], index: 1, kind: output, shape index: {}]
  // Predicated region
  $region2: #{tile.18} parent=0 // pred_check
    _
  $region3: #{tile.18} parent=0 // pred_check_branch
    %3 = sbr.rel (0) target = $region5
  $region4: #{tile.18} parent=0 // pred_region
    _
  $region5: #{tile.18} parent=0 // pred_fallthru
    _
  %v4 = vld [vmem:[%s0] ss:$0 sm:$0xff]
  %5 = vst [vmem:[%s1] sm:$0xff] %v4

// kernel: tile.19
$region0: #{tile.19}
  %s0 = inlined_call_operand.vmem [shape: f32[8,8], index: 0, kind: input, shape index: {}]
  %s1 = inlined_call_operand.vmem [shape: f32[1,64], index: 1, kind: output, shape index: {}]
  $region1: #{tile.19} parent=0
    #allocation0 [shape = 'u8[4096]{0}', space=vmem, size = 0x1000, scoped, tag = 'scoped mem for output reshape']
    %v2 = vld [vmem:[%s0] sm:$0x1]
    %vm3 = vcmask 64512
    %4 = vst.msk [vmem:[#allocation0] sm:$0x1] %vm3, %v2
    %s5 = scalar_lea.vmem %s0, 7
    %v6 = vld [vmem:[%s5] sm:$0x1]
    %7 = vrot.lane.b32.xlu0 %v6, 56
    %v8 = vpop.permute.xlu0 %7
    %vm9 = vcmask 523712
    %10 = vst.msk [vmem:[#allocation0] sm:$0x1] %vm9, %v8
    %s11 = scalar_lea.vmem %s0, 6
    %v12 = vld [vmem:[%s11] sm:$0x1]
    %13 = vrot.lane.b32.xlu0 %v12, 48
    %v14 = vpop.permute.xlu0 %13
    %vm15 = vcmask 458112
    %16 = vst.msk [vmem:[#allocation0] sm:$0x1] %vm15, %v14
    %s17 = scalar_lea.vmem %s0, 5
    %v18 = vld [vmem:[%s17] sm:$0x1]
    %19 = vrot.lane.b32.xlu0 %v18, 40
    %v20 = vpop.permute.xlu0 %19
    %vm21 = vcmask 392512
    %22 = vst.msk [vmem:[#allocation0] sm:$0x1] %vm21, %v20
    %s23 = scalar_lea.vmem %s0, 4
    %v24 = vld [vmem:[%s23] sm:$0x1]
    %25 = vrot.lane.b32.xlu0 %v24, 32
    %v26 = vpop.permute.xlu0 %25
    %vm27 = vcmask 326912
    %28 = vst.msk [vmem:[#allocation0] sm:$0x1] %vm27, %v26
    %s29 = scalar_lea.vmem %s0, 3
    %v30 = vld [vmem:[%s29] sm:$0x1]
    %31 = vrot.lane.b32.xlu0 %v30, 24
    %v32 = vpop.permute.xlu0 %31
    %vm33 = vcmask 261312
    %34 = vst.msk [vmem:[#allocation0] sm:$0x1] %vm33, %v32
    %s35 = scalar_lea.vmem %s0, 2
    %v36 = vld [vmem:[%s35] sm:$0x1]
    %37 = vrot.lane.b32.xlu0 %v36, 16
    %v38 = vpop.permute.xlu0 %37
    %vm39 = vcmask 195712
    %40 = vst.msk [vmem:[#allocation0] sm:$0x1] %vm39, %v38
    %s41 = scalar_lea.vmem %s0, 1
    %v42 = vld [vmem:[%s41] sm:$0x1]
    %43 = vrot.lane.b32.xlu0 %v42, 8
    %v44 = vpop.permute.xlu0 %43
    %vm45 = vcmask 130112
    %46 = vst.msk [vmem:[#allocation0] sm:$0x1] %vm45, %v44
    %s48 = ssub.s32 2, 1
    %v49 = vld [vmem:[#allocation0] sm:%s48]
    %s51 = ssub.s32 2, 1
    %52 = vst [vmem:[%s1] sm:%s51] %v49

// kernel: resblock_pallas.1
$region0: #{resblock_pallas.1}
  #allocation0 [shape = 'u32[]', space=smem, size = 0x4, offset = 0x4, fixed_abs, tag = 'smem constant byte address 0x4 - core index']
  #allocation1 [shape = 'u32[72,128]{1,0:T(1,128)}', space=vmem, size = 0x9000, scoped, tag = 'internal scratch']
  %s0 = inlined_call_operand.vmem [shape: f32[2,64,288], index: 0, kind: input, shape index: {}]
  %s1 = inlined_call_operand.vmem [shape: f32[288,64], index: 1, kind: input, shape index: {}]
  %s2 = inlined_call_operand.vmem [shape: f32[1,64], index: 2, kind: input, shape index: {}]
  %s3 = inlined_call_operand.vmem [shape: f32[144,64], index: 3, kind: input, shape index: {}]
  %s4 = inlined_call_operand.vmem [shape: f32[9,64,32], index: 4, kind: input, shape index: {}]
  %s5 = inlined_call_operand.vmem [shape: f32[32,32], index: 5, kind: input, shape index: {}]
  %s6 = inlined_call_operand.vmem [shape: f32[1,32], index: 6, kind: input, shape index: {}]
  %s7 = inlined_call_operand.vmem [shape: f32[2,16,32], index: 7, kind: output, shape index: {}]
  %s8 = sld [smem:[#allocation0]]
  $region61: #{resblock_pallas.1} parent=0
    _
  %s10 = ssub.s32 1, %s8
  %s11 = scalar_select 0, %s10, %s8
  loop: start=0, step=1, limit=4
  $region2: #{resblock_pallas.1} parent=0 // loop_pre_header
    _
  $region3: #{resblock_pallas.1} parent=0 // loop_header
    %s13 = sphi 0, %s17
    %p14 = scmp.ge.s32.totalorder %s13, 4
    %s23 = sphi 0, %s25
    %s26 = sphi 0, %s23
    %s27 = sphi 0, %s26
    %s43 = sphi 0, %s27
    %s47 = sphi 0, %s47
    %s49 = sphi 0, %s47
    %s50 = sphi 0, %s49
    %s64 = sphi 0, %s50
    %s68 = sphi 0, %s68
    %s70 = sphi 0, %s68
    %s71 = sphi 0, %s70
    %s85 = sphi 0, %s71
    %s89 = sphi 0, %s89
    %s91 = sphi 0, %s89
    %s92 = sphi 0, %s91
    %s106 = sphi 0, %s92
    %s110 = sphi 0, %s110
    %s112 = sphi 0, %s110
    %s113 = sphi 0, %s112
    %s127 = sphi 0, %s113
    %s131 = sphi 0, %s131
    %s133 = sphi 0, %s131
    %s134 = sphi 0, %s133
    %s148 = sphi 0, %s134
    %s152 = sphi 0, %s152
    %s154 = sphi 0, %s152
    %s155 = sphi 0, %s154
    %s169 = sphi 0, %s155
    %s175 = sphi 0, %s177
    %s178 = sphi 0, %s175
    %s179 = sphi 0, %s178
    %s195 = sphi 0, %s179
  $region4: #{resblock_pallas.1} parent=0 // loop_header_branch
    %16 = sbr.rel (%p14) target = $region8
  $region5: #{resblock_pallas.1} parent=0 // loop_body
    %s18 = ssub.s32 %s13, 1
    %s19 = ssub.s32 %s13, 2
    %s20 = sadd.s32 %s13, 1
    %s21 = ssub.s32 %s13, %s20
    %p22 = scmp.eq.s32.totalorder %s21, 0
    %s24 = sadd.s32 %s23, 1
    %s25 = scalar_select %p22, %s23, %s24
    %p28 = pneg %p22
    %p29 = scmp.eq.s32.totalorder %s13, 1
    %p30 = por %p28, %p29
    %p31 = scmp.ne.s32.totalorder %s23, %s26
    %p32 = scmp.eq.s32.totalorder %s13, 0
    %p33 = por %p31, %p32
    %p34 = scmp.ne.s32.totalorder %s23, %s26
    %p35 = scmp.eq.s32.totalorder %s18, 1
    %p36 = por %p34, %p35
    %p37 = scmp.ne.s32.totalorder %s26, %s27
    %p38 = scmp.eq.s32.totalorder %s18, 0
    %p39 = por %p37, %p38
    %p40 = scmp.ne.s32.totalorder %s26, %s27
    %p41 = scmp.eq.s32.totalorder %s19, 1
    %p42 = por %p40, %p41
    %p44 = scmp.ne.s32.totalorder %s27, %s43
    %p45 = scmp.eq.s32.totalorder %s19, 0
    %p46 = por %p44, %p45
    %s48 = sadd.s32 %s47, 1
    %p51 = scmp.eq.s32.totalorder %s13, 1
    %p52 = scmp.ne.s32.totalorder %s47, %s49
    %p53 = scmp.eq.s32.totalorder %s13, 0
    %p54 = por %p52, %p53
    %p55 = scmp.ne.s32.totalorder %s47, %s49
    %p56 = scmp.eq.s32.totalorder %s18, 1
    %p57 = por %p55, %p56
    %p58 = scmp.ne.s32.totalorder %s49, %s50
    %p59 = scmp.eq.s32.totalorder %s18, 0
    %p60 = por %p58, %p59
    %p61 = scmp.ne.s32.totalorder %s49, %s50
    %p62 = scmp.eq.s32.totalorder %s19, 1
    %p63 = por %p61, %p62
    %p65 = scmp.ne.s32.totalorder %s50, %s64
    %p66 = scmp.eq.s32.totalorder %s19, 0
    %p67 = por %p65, %p66
    %s69 = sadd.s32 %s68, 1
    %p72 = scmp.eq.s32.totalorder %s13, 1
    %p73 = scmp.ne.s32.totalorder %s68, %s70
    %p74 = scmp.eq.s32.totalorder %s13, 0
    %p75 = por %p73, %p74
    %p76 = scmp.ne.s32.totalorder %s68, %s70
    %p77 = scmp.eq.s32.totalorder %s18, 1
    %p78 = por %p76, %p77
    %p79 = scmp.ne.s32.totalorder %s70, %s71
    %p80 = scmp.eq.s32.totalorder %s18, 0
    %p81 = por %p79, %p80
    %p82 = scmp.ne.s32.totalorder %s70, %s71
    %p83 = scmp.eq.s32.totalorder %s19, 1
    %p84 = por %p82, %p83
    %p86 = scmp.ne.s32.totalorder %s71, %s85
    %p87 = scmp.eq.s32.totalorder %s19, 0
    %p88 = por %p86, %p87
    %s90 = sadd.s32 %s89, 1
    %p93 = scmp.eq.s32.totalorder %s13, 1
    %p94 = scmp.ne.s32.totalorder %s89, %s91
    %p95 = scmp.eq.s32.totalorder %s13, 0
    %p96 = por %p94, %p95
    %p97 = scmp.ne.s32.totalorder %s89, %s91
    %p98 = scmp.eq.s32.totalorder %s18, 1
    %p99 = por %p97, %p98
    %p100 = scmp.ne.s32.totalorder %s91, %s92
    %p101 = scmp.eq.s32.totalorder %s18, 0
    %p102 = por %p100, %p101
    %p103 = scmp.ne.s32.totalorder %s91, %s92
    %p104 = scmp.eq.s32.totalorder %s19, 1
    %p105 = por %p103, %p104
    %p107 = scmp.ne.s32.totalorder %s92, %s106
    %p108 = scmp.eq.s32.totalorder %s19, 0
    %p109 = por %p107, %p108
    %s111 = sadd.s32 %s110, 1
    %p114 = scmp.eq.s32.totalorder %s13, 1
    %p115 = scmp.ne.s32.totalorder %s110, %s112
    %p116 = scmp.eq.s32.totalorder %s13, 0
    %p117 = por %p115, %p116
    %p118 = scmp.ne.s32.totalorder %s110, %s112
    %p119 = scmp.eq.s32.totalorder %s18, 1
    %p120 = por %p118, %p119
    %p121 = scmp.ne.s32.totalorder %s112, %s113
    %p122 = scmp.eq.s32.totalorder %s18, 0
    %p123 = por %p121, %p122
    %p124 = scmp.ne.s32.totalorder %s112, %s113
    %p125 = scmp.eq.s32.totalorder %s19, 1
    %p126 = por %p124, %p125
    %p128 = scmp.ne.s32.totalorder %s113, %s127
    %p129 = scmp.eq.s32.totalorder %s19, 0
    %p130 = por %p128, %p129
    %s132 = sadd.s32 %s131, 1
    %p135 = scmp.eq.s32.totalorder %s13, 1
    %p136 = scmp.ne.s32.totalorder %s131, %s133
    %p137 = scmp.eq.s32.totalorder %s13, 0
    %p138 = por %p136, %p137
    %p139 = scmp.ne.s32.totalorder %s131, %s133
    %p140 = scmp.eq.s32.totalorder %s18, 1
    %p141 = por %p139, %p140
    %p142 = scmp.ne.s32.totalorder %s133, %s134
    %p143 = scmp.eq.s32.totalorder %s18, 0
    %p144 = por %p142, %p143
    %p145 = scmp.ne.s32.totalorder %s133, %s134
    %p146 = scmp.eq.s32.totalorder %s19, 1
    %p147 = por %p145, %p146
    %p149 = scmp.ne.s32.totalorder %s134, %s148
    %p150 = scmp.eq.s32.totalorder %s19, 0
    %p151 = por %p149, %p150
    %s153 = sadd.s32 %s152, 1
    %p156 = scmp.eq.s32.totalorder %s13, 1
    %p157 = scmp.ne.s32.totalorder %s152, %s154
    %p158 = scmp.eq.s32.totalorder %s13, 0
    %p159 = por %p157, %p158
    %p160 = scmp.ne.s32.totalorder %s152, %s154
    %p161 = scmp.eq.s32.totalorder %s18, 1
    %p162 = por %p160, %p161
    %p163 = scmp.ne.s32.totalorder %s154, %s155
    %p164 = scmp.eq.s32.totalorder %s18, 0
    %p165 = por %p163, %p164
    %p166 = scmp.ne.s32.totalorder %s154, %s155
    %p167 = scmp.eq.s32.totalorder %s19, 1
    %p168 = por %p166, %p167
    %p170 = scmp.ne.s32.totalorder %s155, %s169
    %p171 = scmp.eq.s32.totalorder %s19, 0
    %p172 = por %p170, %p171
    %s173 = ssub.s32 %s13, %s20
    %p174 = scmp.eq.s32.totalorder %s173, 0
    %s176 = sadd.s32 %s175, 1
    %s177 = scalar_select %p174, %s175, %s176
    %p180 = pneg %p174
    %p181 = scmp.eq.s32.totalorder %s13, 1
    %p182 = por %p180, %p181
    %p183 = scmp.ne.s32.totalorder %s175, %s178
    %p184 = scmp.eq.s32.totalorder %s13, 0
    %p185 = por %p183, %p184
    %p186 = scmp.ne.s32.totalorder %s175, %s178
    %p187 = scmp.eq.s32.totalorder %s18, 1
    %p188 = por %p186, %p187
    %p189 = scmp.ne.s32.totalorder %s178, %s179
    %p190 = scmp.eq.s32.totalorder %s18, 0
    %p191 = por %p189, %p190
    %p192 = scmp.ne.s32.totalorder %s178, %s179
    %p193 = scmp.eq.s32.totalorder %s19, 1
    %p194 = por %p192, %p193
    %p196 = scmp.ne.s32.totalorder %s179, %s195
    %p197 = scmp.eq.s32.totalorder %s19, 0
    %p198 = por %p196, %p197
    %p199 = scmp.le.s32.totalorder 1, %s13
    %p200 = scmp.lt.s32.totalorder %s13, 3
    %p201 = pnand %p199, %p200
    %p202 = pneg %p201
    // Predicated region
    $region9: #{resblock_pallas.1} parent=5 // pred_check
      _
    $region10: #{resblock_pallas.1} parent=5 // pred_check_branch
      %204 = sbr.rel (%p201) target = $region12
    $region11: #{resblock_pallas.1} parent=5 // pred_region
      %s205 = ssub.s32 %s13, 1
      // Predicated region
      $region13: #{resblock_pallas.1} parent=11 // pred_check
        %p206 = pneg %p60
      $region14: #{resblock_pallas.1} parent=11 // pred_check_branch
        %208 = sbr.rel (%p206) target = $region16
      $region15: #{resblock_pallas.1} parent=11 // pred_region
        _
      $region16: #{resblock_pallas.1} parent=11 // pred_fallthru
        _
      // Predicated region
      $region17: #{resblock_pallas.1} parent=11 // pred_check
        %p209 = pneg %p81
      $region18: #{resblock_pallas.1} parent=11 // pred_check_branch
        %211 = sbr.rel (%p209) target = $region20
      $region19: #{resblock_pallas.1} parent=11 // pred_region
        _
      $region20: #{resblock_pallas.1} parent=11 // pred_fallthru
        _
      // Predicated region
      $region21: #{resblock_pallas.1} parent=11 // pred_check
        %p212 = pneg %p102
      $region22: #{resblock_pallas.1} parent=11 // pred_check_branch
        %214 = sbr.rel (%p212) target = $region24
      $region23: #{resblock_pallas.1} parent=11 // pred_region
        _
      $region24: #{resblock_pallas.1} parent=11 // pred_fallthru
        _
      // Predicated region
      $region25: #{resblock_pallas.1} parent=11 // pred_check
        %p215 = pneg %p123
      $region26: #{resblock_pallas.1} parent=11 // pred_check_branch
        %217 = sbr.rel (%p215) target = $region28
      $region27: #{resblock_pallas.1} parent=11 // pred_region
        _
      $region28: #{resblock_pallas.1} parent=11 // pred_fallthru
        _
      // Predicated region
      $region29: #{resblock_pallas.1} parent=11 // pred_check
        %p218 = pneg %p144
      $region30: #{resblock_pallas.1} parent=11 // pred_check_branch
        %220 = sbr.rel (%p218) target = $region32
      $region31: #{resblock_pallas.1} parent=11 // pred_region
        _
      $region32: #{resblock_pallas.1} parent=11 // pred_fallthru
        _
      // Predicated region
      $region33: #{resblock_pallas.1} parent=11 // pred_check
        %p221 = pneg %p165
      $region34: #{resblock_pallas.1} parent=11 // pred_check_branch
        %223 = sbr.rel (%p221) target = $region36
      $region35: #{resblock_pallas.1} parent=11 // pred_region
        _
      $region36: #{resblock_pallas.1} parent=11 // pred_fallthru
        _
    $region12: #{resblock_pallas.1} parent=5 // pred_fallthru
      _
    %p224 = scmp.lt.s32.totalorder %s13, 2
    // Predicated region
    $region37: #{resblock_pallas.1} parent=5 // pred_check
      %p225 = pneg %p224
    $region38: #{resblock_pallas.1} parent=5 // pred_check_branch
      %227 = sbr.rel (%p225) target = $region40
    $region39: #{resblock_pallas.1} parent=5 // pred_region
      // Predicated region
      $region41: #{resblock_pallas.1} parent=39 // pred_check
        %p228 = pneg %p33
      $region42: #{resblock_pallas.1} parent=39 // pred_check_branch
        %230 = sbr.rel (%p228) target = $region44
      $region43: #{resblock_pallas.1} parent=39 // pred_region
        %p231 = scmp.lt.s32.totalorder %s13, 1
        %s232 = scalar_select %p231, %s13, 1
        %s233 = smul.addr %s232, 24
        %s234 = smul.addr %s233, 8
        %s235 = scalar_lea.vmem %s0, %s234
      $region44: #{resblock_pallas.1} parent=39 // pred_fallthru
        _
    $region40: #{resblock_pallas.1} parent=5 // pred_fallthru
      _
    %p236 = scmp.le.s32.totalorder 1, %s13
    %p237 = scmp.lt.s32.totalorder %s13, 3
    %p238 = pnand %p236, %p237
    %p239 = pneg %p238
    // Predicated region
    $region45: #{resblock_pallas.1} parent=5 // pred_check
      _
    $region46: #{resblock_pallas.1} parent=5 // pred_check_branch
      %241 = sbr.rel (%p238) target = $region48
    $region47: #{resblock_pallas.1} parent=5 // pred_region
      %s242 = ssub.s32 %s13, 1
      %p243 = scmp.lt.s32.totalorder %s18, 1
      %s244 = scalar_select %p243, %s18, 1
      %s245 = smul.addr %s244, 24
      %s246 = smul.addr %s245, 8
      %s247 = scalar_lea.vmem %s0, %s246
      %p248 = pneg %p39
      %p249 = pneg %p36
      %p250 = pneg %p60
      %p251 = pneg %p57
      %p252 = pneg %p81
      %p253 = pneg %p78
      %p254 = pneg %p102
      %p255 = pneg %p99
      %p256 = pneg %p123
      %p257 = pneg %p120
      %p258 = pneg %p144
      %p259 = pneg %p141
      %p260 = pneg %p165
      %p261 = pneg %p162
      %p262 = pneg %p191
      %p263 = pneg %p188
      %p264 = scmp.lt.s32.totalorder %s18, 1
      %s265 = scalar_select %p264, %s18, 1
      %s266 = smul.addr %s265, 2
      %s267 = smul.addr %s266, 8
      %s268 = scalar_lea.vmem %s7, %s267
      %p269 = scmp.lt.s32.totalorder %s18, 1
      %s270 = scalar_select %p269, %s18, 1
      %s271 = smul.addr %s270, 24
      %s272 = smul.addr %s271, 8
      %s273 = scalar_lea.vmem %s0, %s272
      %p274 = scmp.lt.s32.totalorder %s18, 1
      %s275 = scalar_select %p274, %s18, 1
      %s276 = smul.addr %s275, 2
      %s277 = smul.addr %s276, 8
      %s278 = scalar_lea.vmem %s7, %s277
      %v279 = vld [vmem:[%s273] sm:$0xff]
      %v280 = vld [vmem:[%s273 + $0x8] sm:$0xff]
      %v281 = vld [vmem:[%s273 + $0x10] sm:$0xff]
      %v282 = vld [vmem:[%s273 + $0x18] sm:$0xff]
      %v283 = vld [vmem:[%s273 + $0x20] sm:$0xff]
      %v284 = vld [vmem:[%s273 + $0x28] sm:$0xff]
      %v285 = vld [vmem:[%s273 + $0x30] sm:$0xff]
      %v286 = vld [vmem:[%s273 + $0x38] sm:$0xff]
      %v287 = vld [vmem:[%s273 + $0x40] sm:$0xff]
      %v288 = vld [vmem:[%s273 + $0x48] sm:$0xff]
      %v289 = vld [vmem:[%s273 + $0x50] sm:$0xff]
      %v290 = vld [vmem:[%s273 + $0x58] sm:$0xff]
      %v291 = vld [vmem:[%s273 + $0x60] sm:$0xff]
      %v292 = vld [vmem:[%s273 + $0x68] sm:$0xff]
      %v293 = vld [vmem:[%s273 + $0x70] sm:$0xff]
      %v294 = vld [vmem:[%s273 + $0x78] sm:$0xff]
      %v295 = vld [vmem:[%s273 + $0x80] sm:$0xff]
      %v296 = vld [vmem:[%s273 + $0x88] sm:$0xff]
      %v297 = vld [vmem:[%s273 + $0x90] sm:$0xff]
      %v298 = vld [vmem:[%s273 + $0x98] sm:$0xff]
      %v299 = vld [vmem:[%s273 + $0xa0] sm:$0xff]
      %v300 = vld [vmem:[%s273 + $0xa8] sm:$0xff]
      %v301 = vld [vmem:[%s273 + $0xb0] sm:$0xff]
      %v302 = vld [vmem:[%s273 + $0xb8] sm:$0xff]
      %v303 = vld [vmem:[%s1] sm:$0xff]
      %v304 = vld [vmem:[%s1 + $0x8] sm:$0xff]
      %v305 = vld [vmem:[%s1 + $0x10] sm:$0xff]
      %v306 = vld [vmem:[%s1 + $0x18] sm:$0xff]
      %v307 = vld [vmem:[%s1 + $0x20] sm:$0xff]
      %v308 = vld [vmem:[%s1 + $0x28] sm:$0xff]
      %v309 = vld [vmem:[%s1 + $0x30] sm:$0xff]
      %v310 = vld [vmem:[%s1 + $0x38] sm:$0xff]
      %v311 = vld [vmem:[%s1 + $0x40] sm:$0xff]
      %v312 = vld [vmem:[%s1 + $0x48] sm:$0xff]
      %v313 = vld [vmem:[%s1 + $0x50] sm:$0xff]
      %v314 = vld [vmem:[%s1 + $0x58] sm:$0xff]
      %v315 = vld [vmem:[%s1 + $0x60] sm:$0xff]
      %v316 = vld [vmem:[%s1 + $0x68] sm:$0xff]
      %v317 = vld [vmem:[%s1 + $0x70] sm:$0xff]
      %v318 = vld [vmem:[%s1 + $0x78] sm:$0xff]
      %v319 = vld [vmem:[%s1 + $0x80] sm:$0xff]
      %v320 = vld [vmem:[%s1 + $0x88] sm:$0xff]
      %v321 = vld [vmem:[%s1 + $0x90] sm:$0xff]
      %v322 = vld [vmem:[%s1 + $0x98] sm:$0xff]
      %v323 = vld [vmem:[%s1 + $0xa0] sm:$0xff]
      %v324 = vld [vmem:[%s1 + $0xa8] sm:$0xff]
      %v325 = vld [vmem:[%s1 + $0xb0] sm:$0xff]
      %v326 = vld [vmem:[%s1 + $0xb8] sm:$0xff]
      %v327 = vld [vmem:[%s1 + $0xc0] sm:$0xff]
      %v328 = vld [vmem:[%s1 + $0xc8] sm:$0xff]
      %v329 = vld [vmem:[%s1 + $0xd0] sm:$0xff]
      %v330 = vld [vmem:[%s1 + $0xd8] sm:$0xff]
      %v331 = vld [vmem:[%s1 + $0xe0] sm:$0xff]
      %v332 = vld [vmem:[%s1 + $0xe8] sm:$0xff]
      %v333 = vld [vmem:[%s1 + $0xf0] sm:$0xff]
      %v334 = vld [vmem:[%s1 + $0xf8] sm:$0xff]
      %v335 = vld [vmem:[%s1 + $0x100] sm:$0xff]
      %v336 = vld [vmem:[%s1 + $0x108] sm:$0xff]
      %v337 = vld [vmem:[%s1 + $0x110] sm:$0xff]
      %v338 = vld [vmem:[%s1 + $0x118] sm:$0xff]
      %v339 = vld [vmem:[%s2] sm:$0x1]
      %v341 = vperm.slane %v339, 0
      %vm343 = vcmask 261120
      %v345 = vsel %vm343, %v281, 0
      %v348 = vsel %vm343, %v284, 0
      %v351 = vsel %vm343, %v287, 0
      %v354 = vsel %vm343, %v290, 0
      %v357 = vsel %vm343, %v293, 0
      %v360 = vsel %vm343, %v296, 0
      %v363 = vsel %vm343, %v299, 0
      %v366 = vsel %vm343, %v302, 0
      %368 = vmatpush.msra.mxu0 %v318
      %369 = vmatpush.msra.mxu0 %v317
      %370 = vmatpush.msra.mxu0 %v316
      %371 = vmatpush.msra.mxu0 %v315
      %372 = vmatpush.msra.mxu0 %v314
      %373 = vmatpush.msra.mxu0 %v313
      %374 = vmatpush.msra.mxu0 %v312
      %375 = vmatpush.msra.mxu0 %v311
      %376 = vmatpush.msra.mxu0 %v310
      %377 = vmatpush.msra.mxu0 %v309
      %378 = vmatpush.msra.mxu0 %v308
      %379 = vmatpush.msra.mxu0 %v307
      %380 = vmatpush.msra.mxu0 %v306
      %381 = vmatpush.msra.mxu0 %v305
      %382 = vmatpush.msra.mxu0 %v304
      %383 = vmatpush.msra.mxu0 %v303
      %384 = vmatmul.f32.gmra.mxu0 %v279
      %v385 = vpop.f32.mrf.mxu0
      %v386 = vadd.f32 %v341, %v385
      %387 = vmatmul.f32.gmra.mxu0 %v282
      %v388 = vpop.f32.mrf.mxu0
      %v389 = vadd.f32 %v341, %v388
      %390 = vmatmul.f32.gmra.mxu0 %v285
      %v391 = vpop.f32.mrf.mxu0
      %v392 = vadd.f32 %v341, %v391
      %393 = vmatmul.f32.gmra.mxu0 %v288
      %v394 = vpop.f32.mrf.mxu0
      %v395 = vadd.f32 %v341, %v394
      %396 = vmatmul.f32.gmra.mxu0 %v291
      %v397 = vpop.f32.mrf.mxu0
      %v398 = vadd.f32 %v341, %v397
      %399 = vmatmul.f32.gmra.mxu0 %v294
      %v400 = vpop.f32.mrf.mxu0
      %v401 = vadd.f32 %v341, %v400
      %402 = vmatmul.f32.gmra.mxu0 %v297
      %v403 = vpop.f32.mrf.mxu0
      %v404 = vadd.f32 %v341, %v403
      %405 = vmatmul.f32.gmra.mxu0 %v300
      %v406 = vpop.f32.mrf.mxu0
      %v407 = vadd.f32 %v341, %v406
      %408 = vdwg.mxu0
      %409 = vmatpush.msra.mxu0 %v334
      %410 = vmatpush.msra.mxu0 %v333
      %411 = vmatpush.msra.mxu0 %v332
      %412 = vmatpush.msra.mxu0 %v331
      %413 = vmatpush.msra.mxu0 %v330
      %414 = vmatpush.msra.mxu0 %v329
      %415 = vmatpush.msra.mxu0 %v328
      %416 = vmatpush.msra.mxu0 %v327
      %417 = vmatpush.msra.mxu0 %v326
      %418 = vmatpush.msra.mxu0 %v325
      %419 = vmatpush.msra.mxu0 %v324
      %420 = vmatpush.msra.mxu0 %v323
      %421 = vmatpush.msra.mxu0 %v322
      %422 = vmatpush.msra.mxu0 %v321
      %423 = vmatpush.msra.mxu0 %v320
      %424 = vmatpush.msra.mxu0 %v319
      %425 = vmatmul.f32.gmra.mxu0 %v280
      %v426 = vpop.f32.mrf.mxu0
      %v427 = vadd.f32 %v386, %v426
      %428 = vmatmul.f32.gmra.mxu0 %v283
      %v429 = vpop.f32.mrf.mxu0
      %v430 = vadd.f32 %v389, %v429
      %431 = vmatmul.f32.gmra.mxu0 %v286
      %v432 = vpop.f32.mrf.mxu0
      %v433 = vadd.f32 %v392, %v432
      %434 = vmatmul.f32.gmra.mxu0 %v289
      %v435 = vpop.f32.mrf.mxu0
      %v436 = vadd.f32 %v395, %v435
      %437 = vmatmul.f32.gmra.mxu0 %v292
      %v438 = vpop.f32.mrf.mxu0
      %v439 = vadd.f32 %v398, %v438
      %440 = vmatmul.f32.gmra.mxu0 %v295
      %v441 = vpop.f32.mrf.mxu0
      %v442 = vadd.f32 %v401, %v441
      %443 = vmatmul.f32.gmra.mxu0 %v298
      %v444 = vpop.f32.mrf.mxu0
      %v445 = vadd.f32 %v404, %v444
      %446 = vmatmul.f32.gmra.mxu0 %v301
      %v447 = vpop.f32.mrf.mxu0
      %v448 = vadd.f32 %v407, %v447
      %449 = vdwg.mxu0
      %450 = vmatpush.msra.mxu0 0.0
      %451 = vmatpush.msra.mxu0 0.0
      %452 = vmatpush.msra.mxu0 0.0
      %453 = vmatpush.msra.mxu0 0.0
      %454 = vmatpush.msra.mxu0 0.0
      %455 = vmatpush.msra.mxu0 0.0
      %456 = vmatpush.msra.mxu0 0.0
      %457 = vmatpush.msra.mxu0 0.0
      %458 = vmatpush.msra.mxu0 0.0
      %459 = vmatpush.msra.mxu0 0.0
      %460 = vmatpush.msra.mxu0 0.0
      %461 = vmatpush.msra.mxu0 0.0
      %462 = vmatpush.msra.mxu0 %v338
      %463 = vmatpush.msra.mxu0 %v337
      %464 = vmatpush.msra.mxu0 %v336
      %465 = vmatpush.msra.mxu0 %v335
      %466 = vmatmul.f32.gmra.mxu0 %v345
      %v467 = vpop.f32.mrf.mxu0
      %v468 = vadd.f32 %v427, %v467
      %469 = vmatmul.f32.gmra.mxu0 %v348
      %v470 = vpop.f32.mrf.mxu0
      %v471 = vadd.f32 %v430, %v470
      %472 = vmatmul.f32.gmra.mxu0 %v351
      %v473 = vpop.f32.mrf.mxu0
      %v474 = vadd.f32 %v433, %v473
      %475 = vmatmul.f32.gmra.mxu0 %v354
      %v476 = vpop.f32.mrf.mxu0
      %v477 = vadd.f32 %v436, %v476
      %478 = vmatmul.f32.gmra.mxu0 %v357
      %v479 = vpop.f32.mrf.mxu0
      %v480 = vadd.f32 %v439, %v479
      %481 = vmatmul.f32.gmra.mxu0 %v360
      %v482 = vpop.f32.mrf.mxu0
      %v483 = vadd.f32 %v442, %v482
      %484 = vmatmul.f32.gmra.mxu0 %v363
      %v485 = vpop.f32.mrf.mxu0
      %v486 = vadd.f32 %v445, %v485
      %487 = vmatmul.f32.gmra.mxu0 %v366
      %v488 = vpop.f32.mrf.mxu0
      %v489 = vadd.f32 %v448, %v488
      %490 = vdwg.mxu0
      %499 = vrot.lane.b32.xlu0 %v468, 120
      %v500 = vpop.permute.xlu0 %499
      %501 = vrot.lane.b32.xlu0 %v471, 120
      %v502 = vpop.permute.xlu0 %501
      %503 = vrot.lane.b32.xlu0 %v474, 120
      %v504 = vpop.permute.xlu0 %503
      %505 = vrot.lane.b32.xlu0 %v477, 120
      %v506 = vpop.permute.xlu0 %505
      %507 = vrot.lane.b32.xlu0 %v480, 120
      %v508 = vpop.permute.xlu0 %507
      %509 = vrot.lane.b32.xlu0 %v483, 120
      %v510 = vpop.permute.xlu0 %509
      %511 = vrot.lane.b32.xlu0 %v486, 120
      %v512 = vpop.permute.xlu0 %511
      %513 = vrot.lane.b32.xlu0 %v489, 120
      %v514 = vpop.permute.xlu0 %513
      %523 = vrot.lane.b32.xlu0 %v468, 56
      %v524 = vpop.permute.xlu0 %523
      %525 = vrot.lane.b32.xlu0 %v471, 56
      %v526 = vpop.permute.xlu0 %525
      %527 = vrot.lane.b32.xlu0 %v474, 56
      %v528 = vpop.permute.xlu0 %527
      %529 = vrot.lane.b32.xlu0 %v477, 56
      %v530 = vpop.permute.xlu0 %529
      %531 = vrot.lane.b32.xlu0 %v480, 56
      %v532 = vpop.permute.xlu0 %531
      %533 = vrot.lane.b32.xlu0 %v483, 56
      %v534 = vpop.permute.xlu0 %533
      %535 = vrot.lane.b32.xlu0 %v486, 56
      %v536 = vpop.permute.xlu0 %535
      %537 = vrot.lane.b32.xlu0 %v489, 56
      %v538 = vpop.permute.xlu0 %537
      %vm547 = vcmask 457728
      %v548 = vsel %vm547, %v500, %v524
      %v549 = vsel %vm547, %v502, %v526
      %v550 = vsel %vm547, %v504, %v528
      %v551 = vsel %vm547, %v506, %v530
      %v552 = vsel %vm547, %v508, %v532
      %v553 = vsel %vm547, %v510, %v534
      %v554 = vsel %vm547, %v512, %v536
      %v555 = vsel %vm547, %v514, %v538
      %v556 = vmax.f32 %v468, %v548
      %v557 = vmax.f32 %v471, %v549
      %v558 = vmax.f32 %v474, %v550
      %v559 = vmax.f32 %v477, %v551
      %v560 = vmax.f32 %v480, %v552
      %v561 = vmax.f32 %v483, %v553
      %v562 = vmax.f32 %v486, %v554
      %v563 = vmax.f32 %v489, %v555
      %vm572 = vcmask 1046528
      %v573 = vrot.slane %v556, 1
      %v574 = vrot.slane %v557, 1
      %v575 = vsel %vm572, %v573, %v574
      %v576 = vrot.slane %v558, 1
      %v577 = vsel %vm572, %v574, %v576
      %v578 = vrot.slane %v559, 1
      %v579 = vsel %vm572, %v576, %v578
      %v580 = vrot.slane %v560, 1
      %v581 = vsel %vm572, %v578, %v580
      %v582 = vrot.slane %v561, 1
      %v583 = vsel %vm572, %v580, %v582
      %v584 = vrot.slane %v562, 1
      %v585 = vsel %vm572, %v582, %v584
      %v586 = vrot.slane %v563, 1
      %v587 = vsel %vm572, %v584, %v586
      %v597 = vsel %vm572, %v586, %v573
      %v598 = vmax.f32 %v556, %v575
      %v599 = vmax.f32 %v557, %v577
      %v600 = vmax.f32 %v558, %v579
      %v601 = vmax.f32 %v559, %v581
      %v602 = vmax.f32 %v560, %v583
      %v603 = vmax.f32 %v561, %v585
      %v604 = vmax.f32 %v562, %v587
      %v605 = vmax.f32 %v563, %v597
      %v606 = vmax.f32 %v598, %v599
      %v607 = vmax.f32 %v599, %v600
      %v608 = vmax.f32 %v600, %v601
      %v609 = vmax.f32 %v601, %v602
      %v610 = vmax.f32 %v602, %v603
      %v611 = vmax.f32 %v603, %v604
      %v612 = vmax.f32 %v604, %v605
      %v613 = vmax.f32 %v605, %v598
      %v614 = vmax.f32 %v606, 0.0
      %v615 = vmax.f32 %v607, 0.0
      %v616 = vmax.f32 %v608, 0.0
      %v617 = vmax.f32 %v609, 0.0
      %v618 = vmax.f32 %v610, 0.0
      %v619 = vmax.f32 %v611, 0.0
      %v620 = vmax.f32 %v612, 0.0
      %v621 = vmax.f32 %v613, 0.0
      %v622 = vld [vmem:[%s3] sm:$0xff]
      %v623 = vld [vmem:[%s3 + $0x8] sm:$0xff]
      %v624 = vld [vmem:[%s3 + $0x10] sm:$0xff]
      %v625 = vld [vmem:[%s3 + $0x18] sm:$0xff]
      %v626 = vld [vmem:[%s3 + $0x20] sm:$0xff]
      %v627 = vld [vmem:[%s3 + $0x28] sm:$0xff]
      %v628 = vld [vmem:[%s3 + $0x30] sm:$0xff]
      %v629 = vld [vmem:[%s3 + $0x38] sm:$0xff]
      %v630 = vld [vmem:[%s3 + $0x40] sm:$0xff]
      %v631 = vld [vmem:[%s3 + $0x48] sm:$0xff]
      %v632 = vld [vmem:[%s3 + $0x50] sm:$0xff]
      %v633 = vld [vmem:[%s3 + $0x58] sm:$0xff]
      %v634 = vld [vmem:[%s3 + $0x60] sm:$0xff]
      %v635 = vld [vmem:[%s3 + $0x68] sm:$0xff]
      %v636 = vld [vmem:[%s3 + $0x70] sm:$0xff]
      %v637 = vld [vmem:[%s3 + $0x78] sm:$0xff]
      %v638 = vld [vmem:[%s3 + $0x80] sm:$0xff]
      %v639 = vld [vmem:[%s3 + $0x88] sm:$0xff]
      %vm640 = vcmask 523264
      %v642 = vsel %vm640, %v622, 0
      %v645 = vsel %vm640, %v623, 0
      %v648 = vsel %vm640, %v624, 0
      %v651 = vsel %vm640, %v625, 0
      %v654 = vsel %vm640, %v626, 0
      %v657 = vsel %vm640, %v627, 0
      %v660 = vsel %vm640, %v628, 0
      %v663 = vsel %vm640, %v629, 0
      %v666 = vsel %vm640, %v630, 0
      %v669 = vsel %vm640, %v631, 0
      %v672 = vsel %vm640, %v632, 0
      %v675 = vsel %vm640, %v633, 0
      %v678 = vsel %vm640, %v634, 0
      %v681 = vsel %vm640, %v635, 0
      %v684 = vsel %vm640, %v636, 0
      %v687 = vsel %vm640, %v637, 0
      %v690 = vsel %vm640, %v638, 0
      %v693 = vsel %vm640, %v639, 0
      %695 = vmatpush.msra.mxu0 0.0
      %696 = vmatpush.msra.mxu0 0.0
      %697 = vmatpush.msra.mxu0 0.0
      %698 = vmatpush.msra.mxu0 0.0
      %699 = vmatpush.msra.mxu0 0.0
      %700 = vmatpush.msra.mxu0 0.0
      %701 = vmatpush.msra.mxu0 0.0
      %702 = vmatpush.msra.mxu0 0.0
      %703 = vmatpush.msra.mxu0 %v621
      %704 = vmatpush.msra.mxu0 %v620
      %705 = vmatpush.msra.mxu0 %v619
      %706 = vmatpush.msra.mxu0 %v618
      %707 = vmatpush.msra.mxu0 %v617
      %708 = vmatpush.msra.mxu0 %v616
      %709 = vmatpush.msra.mxu0 %v615
      %710 = vmatpush.msra.mxu0 %v614
      %711 = vmatmul.f32.gmra.mxu0 %v642
      %v712 = vpop.f32.mrf.mxu0
      %v713 = vadd.f32 0.0, %v712
      %714 = vmatmul.f32.gmra.mxu0 %v645
      %v715 = vpop.f32.mrf.mxu0
      %v716 = vadd.f32 0.0, %v715
      %717 = vmatmul.f32.gmra.mxu0 %v648
      %v718 = vpop.f32.mrf.mxu0
      %v719 = vadd.f32 0.0, %v718
      %720 = vmatmul.f32.gmra.mxu0 %v651
      %v721 = vpop.f32.mrf.mxu0
      %v722 = vadd.f32 0.0, %v721
      %723 = vmatmul.f32.gmra.mxu0 %v654
      %v724 = vpop.f32.mrf.mxu0
      %v725 = vadd.f32 0.0, %v724
      %726 = vmatmul.f32.gmra.mxu0 %v657
      %v727 = vpop.f32.mrf.mxu0
      %v728 = vadd.f32 0.0, %v727
      %729 = vmatmul.f32.gmra.mxu0 %v660
      %v730 = vpop.f32.mrf.mxu0
      %v731 = vadd.f32 0.0, %v730
      %732 = vmatmul.f32.gmra.mxu0 %v663
      %v733 = vpop.f32.mrf.mxu0
      %v734 = vadd.f32 0.0, %v733
      %735 = vmatmul.f32.gmra.mxu0 %v666
      %v736 = vpop.f32.mrf.mxu0
      %v737 = vadd.f32 0.0, %v736
      %738 = vmatmul.f32.gmra.mxu0 %v669
      %v739 = vpop.f32.mrf.mxu0
      %v740 = vadd.f32 0.0, %v739
      %741 = vmatmul.f32.gmra.mxu0 %v672
      %v742 = vpop.f32.mrf.mxu0
      %v743 = vadd.f32 0.0, %v742
      %744 = vmatmul.f32.gmra.mxu0 %v675
      %v745 = vpop.f32.mrf.mxu0
      %v746 = vadd.f32 0.0, %v745
      %747 = vmatmul.f32.gmra.mxu0 %v678
      %v748 = vpop.f32.mrf.mxu0
      %v749 = vadd.f32 0.0, %v748
      %750 = vmatmul.f32.gmra.mxu0 %v681
      %v751 = vpop.f32.mrf.mxu0
      %v752 = vadd.f32 0.0, %v751
      %753 = vmatmul.f32.gmra.mxu0 %v684
      %v754 = vpop.f32.mrf.mxu0
      %v755 = vadd.f32 0.0, %v754
      %756 = vmatmul.f32.gmra.mxu0 %v687
      %v757 = vpop.f32.mrf.mxu0
      %v758 = vadd.f32 0.0, %v757
      %759 = vmatmul.f32.gmra.mxu0 %v690
      %v760 = vpop.f32.mrf.mxu0
      %v761 = vadd.f32 0.0, %v760
      %762 = vmatmul.f32.gmra.mxu0 %v693
      %v763 = vpop.f32.mrf.mxu0
      %v764 = vadd.f32 0.0, %v763
      %765 = vdwg.mxu0
      %v766 = vld [vmem:[%s4] sm:$0xff]
      %v767 = vld [vmem:[%s4 + $0x8] sm:$0xff]
      %v768 = vld [vmem:[%s4 + $0x10] sm:$0xff]
      %v769 = vld [vmem:[%s4 + $0x18] sm:$0xff]
      %v770 = vld [vmem:[%s4 + $0x20] sm:$0xff]
      %v771 = vld [vmem:[%s4 + $0x28] sm:$0xff]
      %v772 = vld [vmem:[%s4 + $0x30] sm:$0xff]
      %v773 = vld [vmem:[%s4 + $0x38] sm:$0xff]
      %s774 = scalar_lea.vmem %s4, 64
      %v775 = vld [vmem:[%s774] sm:$0xff]
      %v776 = vld [vmem:[%s774 + $0x8] sm:$0xff]
      %v777 = vld [vmem:[%s774 + $0x10] sm:$0xff]
      %v778 = vld [vmem:[%s774 + $0x18] sm:$0xff]
      %v779 = vld [vmem:[%s774 + $0x20] sm:$0xff]
      %v780 = vld [vmem:[%s774 + $0x28] sm:$0xff]
      %v781 = vld [vmem:[%s774 + $0x30] sm:$0xff]
      %v782 = vld [vmem:[%s774 + $0x38] sm:$0xff]
      %v784 = vsel %vm640, %v719, 0
      %v787 = vsel %vm640, %v722, 0
      %789 = vmatpush.msra.mxu0 0.0
      %790 = vmatpush.msra.mxu0 0.0
      %791 = vmatpush.msra.mxu0 0.0
      %792 = vmatpush.msra.mxu0 0.0
      %793 = vmatpush.msra.mxu0 0.0
      %794 = vmatpush.msra.mxu0 0.0
      %795 = vmatpush.msra.mxu0 0.0
      %796 = vmatpush.msra.mxu0 0.0
      %797 = vmatpush.msra.mxu0 %v782
      %798 = vmatpush.msra.mxu0 %v781
      %799 = vmatpush.msra.mxu0 %v780
      %800 = vmatpush.msra.mxu0 %v779
      %801 = vmatpush.msra.mxu0 %v778
      %802 = vmatpush.msra.mxu0 %v777
      %803 = vmatpush.msra.mxu0 %v776
      %804 = vmatpush.msra.mxu0 %v775
      %805 = vmatmul.f32.gmra.mxu0 %v784
      %v806 = vpop.f32.mrf.mxu0
      %v807 = vadd.f32 0.0, %v806
      %808 = vmatmul.f32.gmra.mxu0 %v787
      %v809 = vpop.f32.mrf.mxu0
      %v810 = vadd.f32 0.0, %v809
      %811 = vdwg.mxu0
      %v813 = vsel %vm640, %v713, 0
      %v816 = vsel %vm640, %v716, 0
      %818 = vmatpush.msra.mxu0 0.0
      %819 = vmatpush.msra.mxu0 0.0
      %820 = vmatpush.msra.mxu0 0.0
      %821 = vmatpush.msra.mxu0 0.0
      %822 = vmatpush.msra.mxu0 0.0
      %823 = vmatpush.msra.mxu0 0.0
      %824 = vmatpush.msra.mxu0 0.0
      %825 = vmatpush.msra.mxu0 0.0
      %826 = vmatpush.msra.mxu0 %v773
      %827 = vmatpush.msra.mxu0 %v772
      %828 = vmatpush.msra.mxu0 %v771
      %829 = vmatpush.msra.mxu0 %v770
      %830 = vmatpush.msra.mxu0 %v769
      %831 = vmatpush.msra.mxu0 %v768
      %832 = vmatpush.msra.mxu0 %v767
      %833 = vmatpush.msra.mxu0 %v766
      %834 = vmatmul.f32.gmra.mxu0 %v813
      %v835 = vpop.f32.mrf.mxu0
      %v836 = vadd.f32 %v807, %v835
      %837 = vmatmul.f32.gmra.mxu0 %v816
      %v838 = vpop.f32.mrf.mxu0
      %v839 = vadd.f32 %v810, %v838
      %840 = vdwg.mxu0
      %s841 = scalar_lea.vmem %s4, 128
      %v842 = vld [vmem:[%s841] sm:$0xff]
      %v843 = vld [vmem:[%s841 + $0x8] sm:$0xff]
      %v844 = vld [vmem:[%s841 + $0x10] sm:$0xff]
      %v845 = vld [vmem:[%s841 + $0x18] sm:$0xff]
      %v846 = vld [vmem:[%s841 + $0x20] sm:$0xff]
      %v847 = vld [vmem:[%s841 + $0x28] sm:$0xff]
      %v848 = vld [vmem:[%s841 + $0x30] sm:$0xff]
      %v849 = vld [vmem:[%s841 + $0x38] sm:$0xff]
      %v851 = vsel %vm640, %v725, 0
      %v854 = vsel %vm640, %v728, 0
      %856 = vmatpush.msra.mxu0 0.0
      %857 = vmatpush.msra.mxu0 0.0
      %858 = vmatpush.msra.mxu0 0.0
      %859 = vmatpush.msra.mxu0 0.0
      %860 = vmatpush.msra.mxu0 0.0
      %861 = vmatpush.msra.mxu0 0.0
      %862 = vmatpush.msra.mxu0 0.0
      %863 = vmatpush.msra.mxu0 0.0
      %864 = vmatpush.msra.mxu0 %v849
      %865 = vmatpush.msra.mxu0 %v848
      %866 = vmatpush.msra.mxu0 %v847
      %867 = vmatpush.msra.mxu0 %v846
      %868 = vmatpush.msra.mxu0 %v845
      %869 = vmatpush.msra.mxu0 %v844
      %870 = vmatpush.msra.mxu0 %v843
      %871 = vmatpush.msra.mxu0 %v842
      %872 = vmatmul.f32.gmra.mxu0 %v851
      %v873 = vpop.f32.mrf.mxu0
      %v874 = vadd.f32 0.0, %v873
      %875 = vmatmul.f32.gmra.mxu0 %v854
      %v876 = vpop.f32.mrf.mxu0
      %v877 = vadd.f32 0.0, %v876
      %878 = vdwg.mxu0
      %v879 = vadd.f32 %v836, %v874
      %v880 = vadd.f32 %v839, %v877
      %s881 = scalar_lea.vmem %s4, 192
      %v882 = vld [vmem:[%s881] sm:$0xff]
      %v883 = vld [vmem:[%s881 + $0x8] sm:$0xff]
      %v884 = vld [vmem:[%s881 + $0x10] sm:$0xff]
      %v885 = vld [vmem:[%s881 + $0x18] sm:$0xff]
      %v886 = vld [vmem:[%s881 + $0x20] sm:$0xff]
      %v887 = vld [vmem:[%s881 + $0x28] sm:$0xff]
      %v888 = vld [vmem:[%s881 + $0x30] sm:$0xff]
      %v889 = vld [vmem:[%s881 + $0x38] sm:$0xff]
      %v891 = vsel %vm640, %v731, 0
      %v894 = vsel %vm640, %v734, 0
      %896 = vmatpush.msra.mxu0 0.0
      %897 = vmatpush.msra.mxu0 0.0
      %898 = vmatpush.msra.mxu0 0.0
      %899 = vmatpush.msra.mxu0 0.0
      %900 = vmatpush.msra.mxu0 0.0
      %901 = vmatpush.msra.mxu0 0.0
      %902 = vmatpush.msra.mxu0 0.0
      %903 = vmatpush.msra.mxu0 0.0
      %904 = vmatpush.msra.mxu0 %v889
      %905 = vmatpush.msra.mxu0 %v888
      %906 = vmatpush.msra.mxu0 %v887
      %907 = vmatpush.msra.mxu0 %v886
      %908 = vmatpush.msra.mxu0 %v885
      %909 = vmatpush.msra.mxu0 %v884
      %910 = vmatpush.msra.mxu0 %v883
      %911 = vmatpush.msra.mxu0 %v882
      %912 = vmatmul.f32.gmra.mxu0 %v891
      %v913 = vpop.f32.mrf.mxu0
      %v914 = vadd.f32 0.0, %v913
      %915 = vmatmul.f32.gmra.mxu0 %v894
      %v916 = vpop.f32.mrf.mxu0
      %v917 = vadd.f32 0.0, %v916
      %918 = vdwg.mxu0
      %v919 = vadd.f32 %v879, %v914
      %v920 = vadd.f32 %v880, %v917
      %s921 = scalar_lea.vmem %s4, 256
      %v922 = vld [vmem:[%s921] sm:$0xff]
      %v923 = vld [vmem:[%s921 + $0x8] sm:$0xff]
      %v924 = vld [vmem:[%s921 + $0x10] sm:$0xff]
      %v925 = vld [vmem:[%s921 + $0x18] sm:$0xff]
      %v926 = vld [vmem:[%s921 + $0x20] sm:$0xff]
      %v927 = vld [vmem:[%s921 + $0x28] sm:$0xff]
      %v928 = vld [vmem:[%s921 + $0x30] sm:$0xff]
      %v929 = vld [vmem:[%s921 + $0x38] sm:$0xff]
      %v931 = vsel %vm640, %v737, 0
      %v934 = vsel %vm640, %v740, 0
      %936 = vmatpush.msra.mxu0 0.0
      %937 = vmatpush.msra.mxu0 0.0
      %938 = vmatpush.msra.mxu0 0.0
      %939 = vmatpush.msra.mxu0 0.0
      %940 = vmatpush.msra.mxu0 0.0
      %941 = vmatpush.msra.mxu0 0.0
      %942 = vmatpush.msra.mxu0 0.0
      %943 = vmatpush.msra.mxu0 0.0
      %944 = vmatpush.msra.mxu0 %v929
      %945 = vmatpush.msra.mxu0 %v928
      %946 = vmatpush.msra.mxu0 %v927
      %947 = vmatpush.msra.mxu0 %v926
      %948 = vmatpush.msra.mxu0 %v925
      %949 = vmatpush.msra.mxu0 %v924
      %950 = vmatpush.msra.mxu0 %v923
      %951 = vmatpush.msra.mxu0 %v922
      %952 = vmatmul.f32.gmra.mxu0 %v931
      %v953 = vpop.f32.mrf.mxu0
      %v954 = vadd.f32 0.0, %v953
      %955 = vmatmul.f32.gmra.mxu0 %v934
      %v956 = vpop.f32.mrf.mxu0
      %v957 = vadd.f32 0.0, %v956
      %958 = vdwg.mxu0
      %v959 = vadd.f32 %v919, %v954
      %v960 = vadd.f32 %v920, %v957
      %s961 = scalar_lea.vmem %s4, 320
      %v962 = vld [vmem:[%s961] sm:$0xff]
      %v963 = vld [vmem:[%s961 + $0x8] sm:$0xff]
      %v964 = vld [vmem:[%s961 + $0x10] sm:$0xff]
      %v965 = vld [vmem:[%s961 + $0x18] sm:$0xff]
      %v966 = vld [vmem:[%s961 + $0x20] sm:$0xff]
      %v967 = vld [vmem:[%s961 + $0x28] sm:$0xff]
      %v968 = vld [vmem:[%s961 + $0x30] sm:$0xff]
      %v969 = vld [vmem:[%s961 + $0x38] sm:$0xff]
      %v971 = vsel %vm640, %v743, 0
      %v974 = vsel %vm640, %v746, 0
      %976 = vmatpush.msra.mxu0 0.0
      %977 = vmatpush.msra.mxu0 0.0
      %978 = vmatpush.msra.mxu0 0.0
      %979 = vmatpush.msra.mxu0 0.0
      %980 = vmatpush.msra.mxu0 0.0
      %981 = vmatpush.msra.mxu0 0.0
      %982 = vmatpush.msra.mxu0 0.0
      %983 = vmatpush.msra.mxu0 0.0
      %984 = vmatpush.msra.mxu0 %v969
      %985 = vmatpush.msra.mxu0 %v968
      %986 = vmatpush.msra.mxu0 %v967
      %987 = vmatpush.msra.mxu0 %v966
      %988 = vmatpush.msra.mxu0 %v965
      %989 = vmatpush.msra.mxu0 %v964
      %990 = vmatpush.msra.mxu0 %v963
      %991 = vmatpush.msra.mxu0 %v962
      %992 = vmatmul.f32.gmra.mxu0 %v971
      %v993 = vpop.f32.mrf.mxu0
      %v994 = vadd.f32 0.0, %v993
      %995 = vmatmul.f32.gmra.mxu0 %v974
      %v996 = vpop.f32.mrf.mxu0
      %v997 = vadd.f32 0.0, %v996
      %998 = vdwg.mxu0
      %v999 = vadd.f32 %v959, %v994
      %v1000 = vadd.f32 %v960, %v997
      %s1001 = scalar_lea.vmem %s4, 384
      %v1002 = vld [vmem:[%s1001] sm:$0xff]
      %v1003 = vld [vmem:[%s1001 + $0x8] sm:$0xff]
      %v1004 = vld [vmem:[%s1001 + $0x10] sm:$0xff]
      %v1005 = vld [vmem:[%s1001 + $0x18] sm:$0xff]
      %v1006 = vld [vmem:[%s1001 + $0x20] sm:$0xff]
      %v1007 = vld [vmem:[%s1001 + $0x28] sm:$0xff]
      %v1008 = vld [vmem:[%s1001 + $0x30] sm:$0xff]
      %v1009 = vld [vmem:[%s1001 + $0x38] sm:$0xff]
      %v1011 = vsel %vm640, %v749, 0
      %v1014 = vsel %vm640, %v752, 0
      %1016 = vmatpush.msra.mxu0 0.0
      %1017 = vmatpush.msra.mxu0 0.0
      %1018 = vmatpush.msra.mxu0 0.0
      %1019 = vmatpush.msra.mxu0 0.0
      %1020 = vmatpush.msra.mxu0 0.0
      %1021 = vmatpush.msra.mxu0 0.0
      %1022 = vmatpush.msra.mxu0 0.0
      %1023 = vmatpush.msra.mxu0 0.0
      %1024 = vmatpush.msra.mxu0 %v1009
      %1025 = vmatpush.msra.mxu0 %v1008
      %1026 = vmatpush.msra.mxu0 %v1007
      %1027 = vmatpush.msra.mxu0 %v1006
      %1028 = vmatpush.msra.mxu0 %v1005
      %1029 = vmatpush.msra.mxu0 %v1004
      %1030 = vmatpush.msra.mxu0 %v1003
      %1031 = vmatpush.msra.mxu0 %v1002
      %1032 = vmatmul.f32.gmra.mxu0 %v1011
      %v1033 = vpop.f32.mrf.mxu0
      %v1034 = vadd.f32 0.0, %v1033
      %1035 = vmatmul.f32.gmra.mxu0 %v1014
      %v1036 = vpop.f32.mrf.mxu0
      %v1037 = vadd.f32 0.0, %v1036
      %1038 = vdwg.mxu0
      %v1039 = vadd.f32 %v999, %v1034
      %v1040 = vadd.f32 %v1000, %v1037
      %s1041 = scalar_lea.vmem %s4, 448
      %v1042 = vld [vmem:[%s1041] sm:$0xff]
      %v1043 = vld [vmem:[%s1041 + $0x8] sm:$0xff]
      %v1044 = vld [vmem:[%s1041 + $0x10] sm:$0xff]
      %v1045 = vld [vmem:[%s1041 + $0x18] sm:$0xff]
      %v1046 = vld [vmem:[%s1041 + $0x20] sm:$0xff]
      %v1047 = vld [vmem:[%s1041 + $0x28] sm:$0xff]
      %v1048 = vld [vmem:[%s1041 + $0x30] sm:$0xff]
      %v1049 = vld [vmem:[%s1041 + $0x38] sm:$0xff]
      %v1051 = vsel %vm640, %v755, 0
      %v1054 = vsel %vm640, %v758, 0
      %1056 = vmatpush.msra.mxu0 0.0
      %1057 = vmatpush.msra.mxu0 0.0
      %1058 = vmatpush.msra.mxu0 0.0
      %1059 = vmatpush.msra.mxu0 0.0
      %1060 = vmatpush.msra.mxu0 0.0
      %1061 = vmatpush.msra.mxu0 0.0
      %1062 = vmatpush.msra.mxu0 0.0
      %1063 = vmatpush.msra.mxu0 0.0
      %1064 = vmatpush.msra.mxu0 %v1049
      %1065 = vmatpush.msra.mxu0 %v1048
      %1066 = vmatpush.msra.mxu0 %v1047
      %1067 = vmatpush.msra.mxu0 %v1046
      %1068 = vmatpush.msra.mxu0 %v1045
      %1069 = vmatpush.msra.mxu0 %v1044
      %1070 = vmatpush.msra.mxu0 %v1043
      %1071 = vmatpush.msra.mxu0 %v1042
      %1072 = vmatmul.f32.gmra.mxu0 %v1051
      %v1073 = vpop.f32.mrf.mxu0
      %v1074 = vadd.f32 0.0, %v1073
      %1075 = vmatmul.f32.gmra.mxu0 %v1054
      %v1076 = vpop.f32.mrf.mxu0
      %v1077 = vadd.f32 0.0, %v1076
      %1078 = vdwg.mxu0
      %v1079 = vadd.f32 %v1039, %v1074
      %v1080 = vadd.f32 %v1040, %v1077
      %s1081 = scalar_lea.vmem %s4, 512
      %v1082 = vld [vmem:[%s1081] sm:$0xff]
      %v1083 = vld [vmem:[%s1081 + $0x8] sm:$0xff]
      %v1084 = vld [vmem:[%s1081 + $0x10] sm:$0xff]
      %v1085 = vld [vmem:[%s1081 + $0x18] sm:$0xff]
      %v1086 = vld [vmem:[%s1081 + $0x20] sm:$0xff]
      %v1087 = vld [vmem:[%s1081 + $0x28] sm:$0xff]
      %v1088 = vld [vmem:[%s1081 + $0x30] sm:$0xff]
      %v1089 = vld [vmem:[%s1081 + $0x38] sm:$0xff]
      %v1091 = vsel %vm640, %v761, 0
      %v1094 = vsel %vm640, %v764, 0
      %1096 = vmatpush.msra.mxu0 0.0
      %1097 = vmatpush.msra.mxu0 0.0
      %1098 = vmatpush.msra.mxu0 0.0
      %1099 = vmatpush.msra.mxu0 0.0
      %1100 = vmatpush.msra.mxu0 0.0
      %1101 = vmatpush.msra.mxu0 0.0
      %1102 = vmatpush.msra.mxu0 0.0
      %1103 = vmatpush.msra.mxu0 0.0
      %1104 = vmatpush.msra.mxu0 %v1089
      %1105 = vmatpush.msra.mxu0 %v1088
      %1106 = vmatpush.msra.mxu0 %v1087
      %1107 = vmatpush.msra.mxu0 %v1086
      %1108 = vmatpush.msra.mxu0 %v1085
      %1109 = vmatpush.msra.mxu0 %v1084
      %1110 = vmatpush.msra.mxu0 %v1083
      %1111 = vmatpush.msra.mxu0 %v1082
      %1112 = vmatmul.f32.gmra.mxu0 %v1091
      %v1113 = vpop.f32.mrf.mxu0
      %v1114 = vadd.f32 0.0, %v1113
      %1115 = vmatmul.f32.gmra.mxu0 %v1094
      %v1116 = vpop.f32.mrf.mxu0
      %v1117 = vadd.f32 0.0, %v1116
      %1118 = vdwg.mxu0
      %v1119 = vadd.f32 %v1079, %v1114
      %v1120 = vadd.f32 %v1080, %v1117
      %v1121 = vld [vmem:[%s3 + $0x40] sm:$0xff]
      %v1122 = vld [vmem:[%s3 + $0x48] sm:$0xff]
      %v1124 = vsel %vm640, %v1121, 0
      %v1127 = vsel %vm640, %v1122, 0
      %1129 = vmatpush.msra.mxu0 0.0
      %1130 = vmatpush.msra.mxu0 0.0
      %1131 = vmatpush.msra.mxu0 0.0
      %1132 = vmatpush.msra.mxu0 0.0
      %1133 = vmatpush.msra.mxu0 0.0
      %1134 = vmatpush.msra.mxu0 0.0
      %1135 = vmatpush.msra.mxu0 0.0
      %1136 = vmatpush.msra.mxu0 0.0
      %1137 = vmatpush.msra.mxu0 %v301
      %1138 = vmatpush.msra.mxu0 %v298
      %1139 = vmatpush.msra.mxu0 %v295
      %1140 = vmatpush.msra.mxu0 %v292
      %1141 = vmatpush.msra.mxu0 %v289
      %1142 = vmatpush.msra.mxu0 %v286
      %1143 = vmatpush.msra.mxu0 %v283
      %1144 = vmatpush.msra.mxu0 %v280
      %1145 = vmatmul.f32.gmra.mxu0 %v1124
      %v1146 = vpop.f32.mrf.mxu0
      %v1147 = vadd.f32 0.0, %v1146
      %1148 = vmatmul.f32.gmra.mxu0 %v1127
      %v1149 = vpop.f32.mrf.mxu0
      %v1150 = vadd.f32 0.0, %v1149
      %1151 = vdwg.mxu0
      %v1152 = vld [vmem:[%s5] sm:$0xff]
      %v1153 = vld [vmem:[%s5 + $0x8] sm:$0xff]
      %v1154 = vld [vmem:[%s5 + $0x10] sm:$0xff]
      %v1155 = vld [vmem:[%s5 + $0x18] sm:$0xff]
      %v1157 = vsel %vm343, %v1147, 0
      %v1160 = vsel %vm343, %v1150, 0
      %1162 = vmatpush.msra.mxu0 0.0
      %1163 = vmatpush.msra.mxu0 0.0
      %1164 = vmatpush.msra.mxu0 0.0
      %1165 = vmatpush.msra.mxu0 0.0
      %1166 = vmatpush.msra.mxu0 0.0
      %1167 = vmatpush.msra.mxu0 0.0
      %1168 = vmatpush.msra.mxu0 0.0
      %1169 = vmatpush.msra.mxu0 0.0
      %1170 = vmatpush.msra.mxu0 0.0
      %1171 = vmatpush.msra.mxu0 0.0
      %1172 = vmatpush.msra.mxu0 0.0
      %1173 = vmatpush.msra.mxu0 0.0
      %1174 = vmatpush.msra.mxu0 %v1155
      %1175 = vmatpush.msra.mxu0 %v1154
      %1176 = vmatpush.msra.mxu0 %v1153
      %1177 = vmatpush.msra.mxu0 %v1152
      %1178 = vmatmul.f32.gmra.mxu0 %v1157
      %v1179 = vpop.f32.mrf.mxu0
      %v1180 = vadd.f32 0.0, %v1179
      %1181 = vmatmul.f32.gmra.mxu0 %v1160
      %v1182 = vpop.f32.mrf.mxu0
      %v1183 = vadd.f32 0.0, %v1182
      %1184 = vdwg.mxu0
      %v1185 = vadd.f32 %v1119, %v1180
      %v1186 = vadd.f32 %v1120, %v1183
      %v1187 = vld [vmem:[%s6] sm:$0x1]
      %v1189 = vperm.slane %v1187, 0
      %v1191 = vadd.f32 %v1185, %v1189
      %v1192 = vadd.f32 %v1186, %v1189
      %v1193 = vmax.f32 %v1191, 0.0
      %v1194 = vmax.f32 %v1192, 0.0
      %1195 = vst.msk [vmem:[%s278] sm:$0xff] %vm343, %v1193
      %1196 = vst.msk [vmem:[%s278 + $0x8] sm:$0xff] %vm343, %v1194
      %p1197 = scmp.lt.s32.totalorder %s18, 1
      %s1198 = scalar_select %p1197, %s18, 1
      %s1199 = smul.addr %s1198, 2
      %s1200 = smul.addr %s1199, 8
      %s1201 = scalar_lea.vmem %s7, %s1200
      // Predicated region
      $region49: #{resblock_pallas.1} parent=47 // pred_check
        %p1202 = pneg %p188
      $region50: #{resblock_pallas.1} parent=47 // pred_check_branch
        %1204 = sbr.rel (%p1202) target = $region52
      $region51: #{resblock_pallas.1} parent=47 // pred_region
        _
      $region52: #{resblock_pallas.1} parent=47 // pred_fallthru
        _
    $region48: #{resblock_pallas.1} parent=5 // pred_fallthru
      _
    %p1205 = scmp.le.s32.totalorder 2, %s13
    // Predicated region
    $region53: #{resblock_pallas.1} parent=5 // pred_check
      %p1206 = pneg %p1205
    $region54: #{resblock_pallas.1} parent=5 // pred_check_branch
      %1208 = sbr.rel (%p1206) target = $region56
    $region55: #{resblock_pallas.1} parent=5 // pred_region
      %s1209 = ssub.s32 %s13, 2
      // Predicated region
      $region57: #{resblock_pallas.1} parent=55 // pred_check
        %p1210 = pneg %p194
      $region58: #{resblock_pallas.1} parent=55 // pred_check_branch
        %1212 = sbr.rel (%p1210) target = $region60
      $region59: #{resblock_pallas.1} parent=55 // pred_region
        %p1213 = scmp.lt.s32.totalorder %s19, 1
        %s1214 = scalar_select %p1213, %s19, 1
        %s1215 = smul.addr %s1214, 2
        %s1216 = smul.addr %s1215, 8
        %s1217 = scalar_lea.vmem %s7, %s1216
      $region60: #{resblock_pallas.1} parent=55 // pred_fallthru
        _
    $region56: #{resblock_pallas.1} parent=5 // pred_fallthru
      _
  $region6: #{resblock_pallas.1} parent=0 // loop_footer
    %s17 = sadd.s32 1, %s13
  $region7: #{resblock_pallas.1} parent=0 // loop_footer_branch
    %12 = sbr.rel target = $region3
  $region8: #{resblock_pallas.1} parent=0 // loop_exit
    _

</llo_original>
